<compile_context>
chip_gen: v7x
topology: tpu7x:2x2x1
jax: 0.10.0
libtpu: 0.0.40
codegen_flags: <defaults>
</compile_context>

<pallas_src>
import functools

import jax
import jax.numpy as jnp
from jax import lax
from jax.experimental import pallas as pl
from jax.experimental.pallas import tpu as pltpu


def _round_up(x, m):
    return ((x + m - 1) // m) * m


# ----------------------------------------------------------------------------
# Fused Pallas kernel: full TCN stack for Bt batch elements per grid step.
# ----------------------------------------------------------------------------
def _tcn_fused_kernel(x_ref, w_ref, b_ref, o_ref, act_ref, skip_ref,
                      *, dilations, paddings, K, L, Bt, max_pad, skip_conn):
    # x_ref   : (Bt, L, Cmax)               network input (channels zero-padded, lane-dense)
    # w_ref   : (num_layers, K*Cmax, Cmax)  im2col weights, bf16 (zero-padded Cin/Cout)
    # b_ref   : (num_layers, 1, Cmax)       biases f32 (zero-padded beyond Cout)
    # o_ref   : (Bt, L, Cmax)               lane-dense output block (sliced to Cout outside)
    # act_ref : (Bt, L + 2*max_pad, Cmax)   VMEM: padded activation, reused every layer
    # skip_ref: (Bt*L, Cmax)                VMEM: skip-connection buffer
    n_layers = len(dilations)
    C = act_ref.shape[-1]

    # Zero once per grid step: halo rows and zero-padded channel lanes stay zero for
    # every layer because only the interior rows [max_pad, max_pad + L) are rewritten.
    act_ref[...] = jnp.zeros_like(act_ref)
    act_ref[:, max_pad:max_pad + L, :] = x_ref[...].astype(act_ref.dtype)

    y = None
    for i in range(n_layers):
        dilation, padding = dilations[i], paddings[i]
        start = max_pad - padding                        # static per layer
        # im2col: K shifted (Bt, L, C) slices of the padded buffer concatenated along
        # lanes -> one (Bt*L, K*C) slab -> a single MXU matmul per layer.
        taps = [act_ref[:, start + k * dilation:start + k * dilation + L, :]
                for k in range(K)]
        slab = jnp.concatenate(taps, axis=-1)            # (Bt, L, K*C) f32
        slab = slab.reshape(Bt * L, K * C).astype(w_ref.dtype)   # bf16 feed to the MXU
        y = jnp.dot(slab, w_ref[i], preferred_element_type=jnp.float32)  # (Bt*L, C) f32
        y = jnp.maximum(y + b_ref[i], 0.0)               # bias + ReLU (f32 epilogue)

        if skip_conn:
            if i == 0:
                skip_ref[...] = y                        # s = o
            elif (i - 1) % 2 == 1:                       # mirrors `if i % 2` over layers[1:]
                y = y + skip_ref[...]                    # post-ReLU skip add
                skip_ref[...] = y

        if i + 1 < n_layers:                             # feed next layer (stays in VMEM)
            act_ref[:, max_pad:max_pad + L, :] = y.reshape(Bt, L, C)

    o_ref[...] = y.reshape(Bt, L, C).astype(o_ref.dtype)  # full-lane (unmasked) stores


def tcn_fused(x_nlc, w_stack, b_stack, *, dilations, paddings, K, skip_conn,
              block_batch):
    """x_nlc: (N, L, Cmax) -> (N, L, Cmax). Entire layer stack in one pallas_call."""
    N, L, cmax = x_nlc.shape
    n_layers, kc, _ = w_stack.shape
    assert n_layers >= 1, "empty layer stack"
    assert cmax % 128 == 0, "channels must be padded to a lane-dense multiple of 128"
    assert N % block_batch == 0, "batch must be padded to a multiple of block_batch"
    # Guard the "same"-length assumption (odd kernel_size): output length must equal L.
    for d, p in zip(dilations, paddings):
        assert (K - 1) * d == 2 * p, (
            "fused TCN kernel assumes symmetric 'same' padding (odd kernel_size); "
            f"got kernel_size={K}, dilation={d}, padding={p}")
    # Round the halo up to a sublane tile so the hot interior write/read is aligned.
    max_pad = _round_up(max(paddings), 8)
    Bt = block_batch

    kernel = functools.partial(
        _tcn_fused_kernel, dilations=tuple(dilations), paddings=tuple(paddings),
        K=K, L=L, Bt=Bt, max_pad=max_pad, skip_conn=skip_conn)

    # Explicit VMEM budget: double-buffered x/out blocks, weight/bias stacks,
    # activation + skip scratch, and the im2col slab transient (with margin).
    w_bytes = int(w_stack.size) * w_stack.dtype.itemsize
    b_bytes = int(b_stack.size) * 4
    need = (2 * Bt * L * cmax * 4            # x blocks (double-buffered)
            + 2 * Bt * L * cmax * 4          # out blocks (double-buffered)
            + 2 * w_bytes + 2 * b_bytes      # weight / bias windows
            + Bt * (L + 2 * max_pad) * cmax * 4   # activation scratch
            + Bt * L * cmax * 4                   # skip scratch
            + Bt * L * K * cmax * 6)              # im2col slab (f32 + bf16 copies)
    vmem_limit = int(min(max(2 * need, 32 * 2 ** 20), 64 * 2 ** 20))

    return pl.pallas_call(
        kernel,
        out_shape=jax.ShapeDtypeStruct((N, L, cmax), x_nlc.dtype),
        grid=(N // Bt,),
        in_specs=[
            pl.BlockSpec((Bt, L, cmax), lambda g: (g, 0, 0)),
            # Grid-invariant windows (constant index_map -> no re-fetch across steps).
            pl.BlockSpec((n_layers, kc, cmax), lambda g: (0, 0, 0)),
            pl.BlockSpec((n_layers, 1, cmax), lambda g: (0, 0, 0)),
        ],
        out_specs=pl.BlockSpec((Bt, L, cmax), lambda g: (g, 0, 0)),
        scratch_shapes=[
            pltpu.VMEM((Bt, L + 2 * max_pad, cmax), jnp.float32),  # padded activation
            pltpu.VMEM((Bt * L, cmax), jnp.float32),               # skip buffer
        ],
        compiler_params=pltpu.CompilerParams(
            dimension_semantics=("parallel",),   # batch-grid shards over v7x's 2 TCs
            vmem_limit_bytes=vmem_limit),
    )(x_nlc, w_stack, b_stack)


# ----------------------------------------------------------------------------
# Parameter init (deterministic) + one-time packing into the fused-kernel layout.
# ----------------------------------------------------------------------------
def init_temporal_conv(key, num_channels, kernel_size, vital_signs, single_tcn=True,
                       lane=128):
    raw = []
    in_ch = vital_signs if single_tcn else 1
    cin0 = in_ch
    for i, out_ch in enumerate(num_channels):
        dilation = 2 ** i
        padding = int((kernel_size - 1) * dilation / 2)
        key, kw, kb = jax.random.split(key, 3)
        # PyTorch Conv1d default init: U(-b, b), b = 1/sqrt(Cin * K)
        bound = 1.0 / (in_ch * kernel_size) ** 0.5
        w = jax.random.uniform(kw, (out_ch, in_ch, kernel_size),
                               jnp.float32, -bound, bound)
        b = jax.random.uniform(kb, (out_ch,), jnp.float32, -bound, bound)
        raw.append(dict(w=w, b=b, dilation=dilation, padding=padding))
        in_ch = out_ch

    # Pack weights ONCE into the lane-dense im2col layout used by the fused kernel:
    #   (Cout, Cin, K) -> (K, Cin, Cout) -> zero-pad Cin/Cout to Cmax (mult of 128)
    #   -> (K*Cmax, Cmax), stored bf16 for the MXU (f32 accumulation in-kernel).
    cmax = _round_up(max([cin0] + list(num_channels)), lane)
    K = kernel_size
    w_stack, b_stack = [], []
    for p in raw:
        cout, cin, _ = p["w"].shape
        wk = jnp.transpose(p["w"], (2, 1, 0))                       # (K, Cin, Cout)
        wk = jnp.pad(wk, ((0, 0), (0, cmax - cin), (0, cmax - cout)))
        w_stack.append(wk.reshape(K * cmax, cmax))
        b_stack.append(jnp.pad(p["b"], (0, cmax - cout)).reshape(1, cmax))

    fused = dict(
        w=jnp.stack(w_stack).astype(jnp.bfloat16),   # (num_layers, K*Cmax, Cmax) bf16
        b=jnp.stack(b_stack),                        # (num_layers, 1, Cmax) f32
        dilations=tuple(p["dilation"] for p in raw),
        paddings=tuple(p["padding"] for p in raw),
        k=K, cmax=cmax, cout_last=num_channels[-1])
    return raw, fused


def temporal_conv_forward(x_ncl, fused, skip_conn, block_batch=2):
    N, cin0, L = x_ncl.shape
    cmax = fused["cmax"]
    x_nlc = jnp.transpose(x_ncl, (0, 2, 1))             # NCL -> NLC (channels on lanes)
    # One-time pads of the NETWORK INPUT only: channels to the lane-dense Cmax and
    # batch to a multiple of block_batch.
    n_pad = (-N) % block_batch
    x_nlc = jnp.pad(x_nlc, ((0, n_pad), (0, 0), (0, cmax - cin0)))
    out_nlc = tcn_fused(x_nlc, fused["w"], fused["b"],
                        dilations=fused["dilations"], paddings=fused["paddings"],
                        K=fused["k"], skip_conn=skip_conn, block_batch=block_batch)
    out_nlc = out_nlc[:N, :, :fused["cout_last"]]        # drop lane / batch padding
    return jnp.transpose(out_nlc, (0, 2, 1))             # back to NCL


# ----------------------------------------------------------------------------
# Pure-JAX reference (lax conv, f32) for correctness check.
# ----------------------------------------------------------------------------
def _ref_layer(x_ncl, p):
    y = lax.conv_general_dilated(
        x_ncl, p["w"], window_strides=(1,),
        padding=[(p["padding"], p["padding"])],
        rhs_dilation=(p["dilation"],),
        dimension_numbers=("NCH", "OIH", "NCH"))
    y = y + p["b"][None, :, None]
    return jnp.maximum(y, 0.0)


def temporal_conv_reference(x_ncl, params, skip_conn):
    if skip_conn:
        o = _ref_layer(x_ncl, params[0])
        s = o
        for idx, p in enumerate(params[1:]):
            o = _ref_layer(o, p)
            if idx % 2:
                o = o + s
                s = o
        return o
    out = x_ncl
    for p in params:
        out = _ref_layer(out, p)
    return out


if __name__ == "__main__":
    key = jax.random.PRNGKey(0)

    # Module config (small): 4 vital-sign channels, 4 TCN levels of 8 channels,
    # kernel_size=3, skip connections on, batch_norm off, single_tcn=True.
    num_channels = [8, 8, 8, 8]
    kernel_size = 3
    vital_signs = 4
    skip_conn = True

    N, L = 4, 16
    Bt = 2          # 2 batch elements per grid step -> grid=(2,), even for v7x's 2 TCs

    kx, kp = jax.random.split(key)
    x = jax.random.normal(kx, (N, vital_signs, L), jnp.float32)   # PyTorch NCL input

    raw_params, fused_params = init_temporal_conv(kp, num_channels, kernel_size,
                                                  vital_signs)

    out = temporal_conv_forward(x, fused_params, skip_conn, block_batch=Bt)
    out = jax.block_until_ready(out)

    ref = temporal_conv_reference(x, raw_params, skip_conn)
    assert out.shape == ref.shape == (N, num_channels[-1], L)
    # bf16 MXU feed (f32 accumulate/epilogue) -> loosened tolerance vs the f32 reference.
    err = float(jnp.max(jnp.abs(out - ref)))
    assert jnp.allclose(out, ref, atol=2e-2, rtol=2e-2), f"max abs err {err}"

    print("KERNEL_OK")
</pallas_src>

<mosaic_0001>
module attributes {stable_mosaic.version = 11 : i64} {
  func.func @_tcn_fused_kernel(%arg0: i32, %arg1: memref<2x16x128xf32, #tpu.memory_space<vmem>>, %arg2: memref<4x384x128xbf16, #tpu.memory_space<vmem>>, %arg3: memref<4x1x128xf32, #tpu.memory_space<vmem>>, %arg4: memref<2x16x128xf32, #tpu.memory_space<vmem>>, %arg5: memref<2x32x128xf32, #tpu.memory_space<vmem>>, %arg6: memref<32x128xf32, #tpu.memory_space<vmem>>) attributes {dimension_semantics = [#tpu.dimension_semantics<parallel>], iteration_bounds = array<i64: 2>, scalar_prefetch = 0 : i64, scratch_operands = 2 : i64, tpu.core_type = #tpu.core_type<tc>, window_params = [{transform_indices = @transform_0, window_bounds = array<i64: 2, 16, 128>}, {pipeline_mode = #tpu.pipeline_mode<synchronous>, transform_indices = @transform_1, window_bounds = array<i64: 4, 384, 128>}, {pipeline_mode = #tpu.pipeline_mode<synchronous>, transform_indices = @transform_2, window_bounds = array<i64: 4, 1, 128>}, {transform_indices = @transform_3, window_bounds = array<i64: 2, 16, 128>}]} {
    %cst = arith.constant 0.000000e+00 : f32
    %0 = vector.broadcast %cst : f32 to vector<2x32x128xf32>
    %c0 = arith.constant 0 : index
    %c0_0 = arith.constant 0 : index
    %c0_1 = arith.constant 0 : index
    %1 = vector.load %arg5[%c0, %c0_0, %c0_1] : memref<2x32x128xf32, #tpu.memory_space<vmem>>, vector<2x32x128xf32>
    tpu.vector_store %arg5[%c0, %c0_0, %c0_1], %0 {strides = array<i32>} : memref<2x32x128xf32, #tpu.memory_space<vmem>>, vector<2x32x128xf32>,
    %c0_2 = arith.constant 0 : index
    %c0_3 = arith.constant 0 : index
    %c0_4 = arith.constant 0 : index
    %2 = vector.load %arg1[%c0_2, %c0_3, %c0_4] : memref<2x16x128xf32, #tpu.memory_space<vmem>>, vector<2x16x128xf32>
    %c0_5 = arith.constant 0 : index
    %c8 = arith.constant 8 : index
    %c0_6 = arith.constant 0 : index
    %3 = vector.load %arg5[%c0_5, %c8, %c0_6] : memref<2x32x128xf32, #tpu.memory_space<vmem>>, vector<2x16x128xf32>
    tpu.vector_store %arg5[%c0_5, %c8, %c0_6], %2 {strides = array<i32>} : memref<2x32x128xf32, #tpu.memory_space<vmem>>, vector<2x16x128xf32>,
    %c0_7 = arith.constant 0 : index
    %c7 = arith.constant 7 : index
    %c0_8 = arith.constant 0 : index
    %4 = vector.load %arg5[%c0_7, %c7, %c0_8] : memref<2x32x128xf32, #tpu.memory_space<vmem>>, vector<2x16x128xf32>
    %c0_9 = arith.constant 0 : index
    %c8_10 = arith.constant 8 : index
    %c0_11 = arith.constant 0 : index
    %5 = vector.load %arg5[%c0_9, %c8_10, %c0_11] : memref<2x32x128xf32, #tpu.memory_space<vmem>>, vector<2x16x128xf32>
    %c0_12 = arith.constant 0 : index
    %c9 = arith.constant 9 : index
    %c0_13 = arith.constant 0 : index
    %6 = vector.load %arg5[%c0_12, %c9, %c0_13] : memref<2x32x128xf32, #tpu.memory_space<vmem>>, vector<2x16x128xf32>
    %7 = tpu.concatenate %4, %5, %6 in 2 : vector<2x16x128xf32>, vector<2x16x128xf32>, vector<2x16x128xf32> -> vector<2x16x384xf32>
    %8 = vector.shape_cast %7 : vector<2x16x384xf32> to vector<32x384xf32>
    %9 = arith.truncf %8 : vector<32x384xf32> to vector<32x384xbf16>
    %c0_14 = arith.constant 0 : index
    %c0_15 = arith.constant 0 : index
    %c0_16 = arith.constant 0 : index
    %10 = vector.load %arg2[%c0_14, %c0_15, %c0_16] : memref<4x384x128xbf16, #tpu.memory_space<vmem>>, vector<1x384x128xbf16>
    %11 = vector.shape_cast %10 : vector<1x384x128xbf16> to vector<384x128xbf16>
    %cst_17 = arith.constant dense<0.000000e+00> : vector<32x128xf32>
    %12 = tpu.matmul %9, %11, %cst_17 {dimension_numbers = #tpu.dot_dimension_numbers<[1], [0], [0], [1], [0, 0, 1, 1], [], []>} : vector<32x384xbf16>, vector<384x128xbf16>, vector<32x128xf32> -> vector<32x128xf32>
    %c0_18 = arith.constant 0 : index
    %c0_19 = arith.constant 0 : index
    %c0_20 = arith.constant 0 : index
    %13 = vector.load %arg3[%c0_18, %c0_19, %c0_20] : memref<4x1x128xf32, #tpu.memory_space<vmem>>, vector<1x1x128xf32>
    %14 = vector.shape_cast %13 : vector<1x1x128xf32> to vector<1x128xf32>
    %15 = vector.broadcast %14 : vector<1x128xf32> to vector<32x128xf32>
    %16 = arith.addf %12, %15 : vector<32x128xf32>
    %cst_21 = arith.constant 0.000000e+00 : f32
    %17 = vector.broadcast %cst_21 : f32 to vector<32x128xf32>
    %18 = arith.maximumf %16, %17 : vector<32x128xf32>
    %c0_22 = arith.constant 0 : index
    %c0_23 = arith.constant 0 : index
    %19 = vector.load %arg6[%c0_22, %c0_23] : memref<32x128xf32, #tpu.memory_space<vmem>>, vector<32x128xf32>
    tpu.vector_store %arg6[%c0_22, %c0_23], %18 {strides = array<i32>} : memref<32x128xf32, #tpu.memory_space<vmem>>, vector<32x128xf32>,
    %20 = vector.shape_cast %18 : vector<32x128xf32> to vector<2x16x128xf32>
    %c0_24 = arith.constant 0 : index
    %c8_25 = arith.constant 8 : index
    %c0_26 = arith.constant 0 : index
    %21 = vector.load %arg5[%c0_24, %c8_25, %c0_26] : memref<2x32x128xf32, #tpu.memory_space<vmem>>, vector<2x16x128xf32>
    tpu.vector_store %arg5[%c0_24, %c8_25, %c0_26], %20 {strides = array<i32>} : memref<2x32x128xf32, #tpu.memory_space<vmem>>, vector<2x16x128xf32>,
    %c0_27 = arith.constant 0 : index
    %c6 = arith.constant 6 : index
    %c0_28 = arith.constant 0 : index
    %22 = vector.load %arg5[%c0_27, %c6, %c0_28] : memref<2x32x128xf32, #tpu.memory_space<vmem>>, vector<2x16x128xf32>
    %c0_29 = arith.constant 0 : index
    %c8_30 = arith.constant 8 : index
    %c0_31 = arith.constant 0 : index
    %23 = vector.load %arg5[%c0_29, %c8_30, %c0_31] : memref<2x32x128xf32, #tpu.memory_space<vmem>>, vector<2x16x128xf32>
    %c0_32 = arith.constant 0 : index
    %c10 = arith.constant 10 : index
    %c0_33 = arith.constant 0 : index
    %24 = vector.load %arg5[%c0_32, %c10, %c0_33] : memref<2x32x128xf32, #tpu.memory_space<vmem>>, vector<2x16x128xf32>
    %25 = tpu.concatenate %22, %23, %24 in 2 : vector<2x16x128xf32>, vector<2x16x128xf32>, vector<2x16x128xf32> -> vector<2x16x384xf32>
    %26 = vector.shape_cast %25 : vector<2x16x384xf32> to vector<32x384xf32>
    %27 = arith.truncf %26 : vector<32x384xf32> to vector<32x384xbf16>
    %c1 = arith.constant 1 : index
    %c0_34 = arith.constant 0 : index
    %c0_35 = arith.constant 0 : index
    %28 = vector.load %arg2[%c1, %c0_34, %c0_35] : memref<4x384x128xbf16, #tpu.memory_space<vmem>>, vector<1x384x128xbf16>
    %29 = vector.shape_cast %28 : vector<1x384x128xbf16> to vector<384x128xbf16>
    %cst_36 = arith.constant dense<0.000000e+00> : vector<32x128xf32>
    %30 = tpu.matmul %27, %29, %cst_36 {dimension_numbers = #tpu.dot_dimension_numbers<[1], [0], [0], [1], [0, 0, 1, 1], [], []>} : vector<32x384xbf16>, vector<384x128xbf16>, vector<32x128xf32> -> vector<32x128xf32>
    %c1_37 = arith.constant 1 : index
    %c0_38 = arith.constant 0 : index
    %c0_39 = arith.constant 0 : index
    %31 = vector.load %arg3[%c1_37, %c0_38, %c0_39] : memref<4x1x128xf32, #tpu.memory_space<vmem>>, vector<1x1x128xf32>
    %32 = vector.shape_cast %31 : vector<1x1x128xf32> to vector<1x128xf32>
    %33 = vector.broadcast %32 : vector<1x128xf32> to vector<32x128xf32>
    %34 = arith.addf %30, %33 : vector<32x128xf32>
    %cst_40 = arith.constant 0.000000e+00 : f32
    %35 = vector.broadcast %cst_40 : f32 to vector<32x128xf32>
    %36 = arith.maximumf %34, %35 : vector<32x128xf32>
    %37 = vector.shape_cast %36 : vector<32x128xf32> to vector<2x16x128xf32>
    %c0_41 = arith.constant 0 : index
    %c8_42 = arith.constant 8 : index
    %c0_43 = arith.constant 0 : index
    %38 = vector.load %arg5[%c0_41, %c8_42, %c0_43] : memref<2x32x128xf32, #tpu.memory_space<vmem>>, vector<2x16x128xf32>
    tpu.vector_store %arg5[%c0_41, %c8_42, %c0_43], %37 {strides = array<i32>} : memref<2x32x128xf32, #tpu.memory_space<vmem>>, vector<2x16x128xf32>,
    %c0_44 = arith.constant 0 : index
    %c4 = arith.constant 4 : index
    %c0_45 = arith.constant 0 : index
    %39 = vector.load %arg5[%c0_44, %c4, %c0_45] : memref<2x32x128xf32, #tpu.memory_space<vmem>>, vector<2x16x128xf32>
    %c0_46 = arith.constant 0 : index
    %c8_47 = arith.constant 8 : index
    %c0_48 = arith.constant 0 : index
    %40 = vector.load %arg5[%c0_46, %c8_47, %c0_48] : memref<2x32x128xf32, #tpu.memory_space<vmem>>, vector<2x16x128xf32>
    %c0_49 = arith.constant 0 : index
    %c12 = arith.constant 12 : index
    %c0_50 = arith.constant 0 : index
    %41 = vector.load %arg5[%c0_49, %c12, %c0_50] : memref<2x32x128xf32, #tpu.memory_space<vmem>>, vector<2x16x128xf32>
    %42 = tpu.concatenate %39, %40, %41 in 2 : vector<2x16x128xf32>, vector<2x16x128xf32>, vector<2x16x128xf32> -> vector<2x16x384xf32>
    %43 = vector.shape_cast %42 : vector<2x16x384xf32> to vector<32x384xf32>
    %44 = arith.truncf %43 : vector<32x384xf32> to vector<32x384xbf16>
    %c2 = arith.constant 2 : index
    %c0_51 = arith.constant 0 : index
    %c0_52 = arith.constant 0 : index
    %45 = vector.load %arg2[%c2, %c0_51, %c0_52] : memref<4x384x128xbf16, #tpu.memory_space<vmem>>, vector<1x384x128xbf16>
    %46 = vector.shape_cast %45 : vector<1x384x128xbf16> to vector<384x128xbf16>
    %cst_53 = arith.constant dense<0.000000e+00> : vector<32x128xf32>
    %47 = tpu.matmul %44, %46, %cst_53 {dimension_numbers = #tpu.dot_dimension_numbers<[1], [0], [0], [1], [0, 0, 1, 1], [], []>} : vector<32x384xbf16>, vector<384x128xbf16>, vector<32x128xf32> -> vector<32x128xf32>
    %c2_54 = arith.constant 2 : index
    %c0_55 = arith.constant 0 : index
    %c0_56 = arith.constant 0 : index
    %48 = vector.load %arg3[%c2_54, %c0_55, %c0_56] : memref<4x1x128xf32, #tpu.memory_space<vmem>>, vector<1x1x128xf32>
    %49 = vector.shape_cast %48 : vector<1x1x128xf32> to vector<1x128xf32>
    %50 = vector.broadcast %49 : vector<1x128xf32> to vector<32x128xf32>
    %51 = arith.addf %47, %50 : vector<32x128xf32>
    %cst_57 = arith.constant 0.000000e+00 : f32
    %52 = vector.broadcast %cst_57 : f32 to vector<32x128xf32>
    %53 = arith.maximumf %51, %52 : vector<32x128xf32>
    %c0_58 = arith.constant 0 : index
    %c0_59 = arith.constant 0 : index
    %54 = vector.load %arg6[%c0_58, %c0_59] : memref<32x128xf32, #tpu.memory_space<vmem>>, vector<32x128xf32>
    %55 = arith.addf %53, %54 : vector<32x128xf32>
    %c0_60 = arith.constant 0 : index
    %c0_61 = arith.constant 0 : index
    %56 = vector.load %arg6[%c0_60, %c0_61] : memref<32x128xf32, #tpu.memory_space<vmem>>, vector<32x128xf32>
    tpu.vector_store %arg6[%c0_60, %c0_61], %55 {strides = array<i32>} : memref<32x128xf32, #tpu.memory_space<vmem>>, vector<32x128xf32>,
    %57 = vector.shape_cast %55 : vector<32x128xf32> to vector<2x16x128xf32>
    %c0_62 = arith.constant 0 : index
    %c8_63 = arith.constant 8 : index
    %c0_64 = arith.constant 0 : index
    %58 = vector.load %arg5[%c0_62, %c8_63, %c0_64] : memref<2x32x128xf32, #tpu.memory_space<vmem>>, vector<2x16x128xf32>
    tpu.vector_store %arg5[%c0_62, %c8_63, %c0_64], %57 {strides = array<i32>} : memref<2x32x128xf32, #tpu.memory_space<vmem>>, vector<2x16x128xf32>,
    %c0_65 = arith.constant 0 : index
    %c0_66 = arith.constant 0 : index
    %c0_67 = arith.constant 0 : index
    %59 = vector.load %arg5[%c0_65, %c0_66, %c0_67] : memref<2x32x128xf32, #tpu.memory_space<vmem>>, vector<2x16x128xf32>
    %c0_68 = arith.constant 0 : index
    %c8_69 = arith.constant 8 : index
    %c0_70 = arith.constant 0 : index
    %60 = vector.load %arg5[%c0_68, %c8_69, %c0_70] : memref<2x32x128xf32, #tpu.memory_space<vmem>>, vector<2x16x128xf32>
    %c0_71 = arith.constant 0 : index
    %c16 = arith.constant 16 : index
    %c0_72 = arith.constant 0 : index
    %61 = vector.load %arg5[%c0_71, %c16, %c0_72] : memref<2x32x128xf32, #tpu.memory_space<vmem>>, vector<2x16x128xf32>
    %62 = tpu.concatenate %59, %60, %61 in 2 : vector<2x16x128xf32>, vector<2x16x128xf32>, vector<2x16x128xf32> -> vector<2x16x384xf32>
    %63 = vector.shape_cast %62 : vector<2x16x384xf32> to vector<32x384xf32>
    %64 = arith.truncf %63 : vector<32x384xf32> to vector<32x384xbf16>
    %c3 = arith.constant 3 : index
    %c0_73 = arith.constant 0 : index
    %c0_74 = arith.constant 0 : index
    %65 = vector.load %arg2[%c3, %c0_73, %c0_74] : memref<4x384x128xbf16, #tpu.memory_space<vmem>>, vector<1x384x128xbf16>
    %66 = vector.shape_cast %65 : vector<1x384x128xbf16> to vector<384x128xbf16>
    %cst_75 = arith.constant dense<0.000000e+00> : vector<32x128xf32>
    %67 = tpu.matmul %64, %66, %cst_75 {dimension_numbers = #tpu.dot_dimension_numbers<[1], [0], [0], [1], [0, 0, 1, 1], [], []>} : vector<32x384xbf16>, vector<384x128xbf16>, vector<32x128xf32> -> vector<32x128xf32>
    %c3_76 = arith.constant 3 : index
    %c0_77 = arith.constant 0 : index
    %c0_78 = arith.constant 0 : index
    %68 = vector.load %arg3[%c3_76, %c0_77, %c0_78] : memref<4x1x128xf32, #tpu.memory_space<vmem>>, vector<1x1x128xf32>
    %69 = vector.shape_cast %68 : vector<1x1x128xf32> to vector<1x128xf32>
    %70 = vector.broadcast %69 : vector<1x128xf32> to vector<32x128xf32>
    %71 = arith.addf %67, %70 : vector<32x128xf32>
    %cst_79 = arith.constant 0.000000e+00 : f32
    %72 = vector.broadcast %cst_79 : f32 to vector<32x128xf32>
    %73 = arith.maximumf %71, %72 : vector<32x128xf32>
    %74 = vector.shape_cast %73 : vector<32x128xf32> to vector<2x16x128xf32>
    %c0_80 = arith.constant 0 : index
    %c0_81 = arith.constant 0 : index
    %c0_82 = arith.constant 0 : index
    %75 = vector.load %arg4[%c0_80, %c0_81, %c0_82] : memref<2x16x128xf32, #tpu.memory_space<vmem>>, vector<2x16x128xf32>
    tpu.vector_store %arg4[%c0_80, %c0_81, %c0_82], %74 {strides = array<i32>} : memref<2x16x128xf32, #tpu.memory_space<vmem>>, vector<2x16x128xf32>,
    return
  }
  func.func @transform_0(%arg0: i32) -> (i32, i32, i32) {
    %c0_i32 = arith.constant 0 : i32
    %c0_i32_0 = arith.constant 0 : i32
    %c0_i32_1 = arith.constant 0 : i32
    return %arg0, %c0_i32, %c0_i32_0 : i32, i32, i32
  }
  func.func @transform_1(%arg0: i32) -> (i32, i32, i32) {
    %c0_i32 = arith.constant 0 : i32
    %c0_i32_0 = arith.constant 0 : i32
    %c0_i32_1 = arith.constant 0 : i32
    %c0_i32_2 = arith.constant 0 : i32
    return %c0_i32, %c0_i32_0, %c0_i32_1 : i32, i32, i32
  }
  func.func @transform_2(%arg0: i32) -> (i32, i32, i32) {
    %c0_i32 = arith.constant 0 : i32
    %c0_i32_0 = arith.constant 0 : i32
    %c0_i32_1 = arith.constant 0 : i32
    %c0_i32_2 = arith.constant 0 : i32
    return %c0_i32, %c0_i32_0, %c0_i32_1 : i32, i32, i32
  }
  func.func @transform_3(%arg0: i32) -> (i32, i32, i32) {
    %c0_i32 = arith.constant 0 : i32
    %c0_i32_0 = arith.constant 0 : i32
    %c0_i32_1 = arith.constant 0 : i32
    return %arg0, %c0_i32, %c0_i32_0 : i32, i32, i32
  }
}

</mosaic_0001>

<llo_original>
// kernel: tpu_custom_call.1
$region0: #{tpu_custom_call.1}
  #allocation0 [shape = 'u32[]', space=smem, size = 0x4, offset = 0x4, fixed_abs, tag = 'smem constant byte address 0x4 - core index']
  #allocation1 [shape = 'u32[144,128]{1,0:T(1,128)}', space=vmem, size = 0x12000, scoped, tag = 'internal scratch']
  #allocation2 [shape = 'f32[2,32,128]{2,1,0:T(8,128)}', space=vmem, size = 0x8000, scoped, tag = 'scratch operand']
  #allocation3 [shape = 'f32[32,128]{1,0:T(8,128)}', space=vmem, size = 0x4000, scoped, tag = 'scratch operand']
  %s0 = inlined_call_operand.hbm [shape: f32[4,16,128], index: 0, kind: input, shape index: {}]
  %s1 = inlined_call_operand.hbm [shape: bf16[4,384,128], index: 1, kind: input, shape index: {}]
  %s2 = inlined_call_operand.vmem [shape: f32[4,1,128], index: 2, kind: input, shape index: {}]
  %s3 = inlined_call_operand.hbm [shape: f32[4,16,128], index: 3, kind: output, shape index: {}]
  %s4 = sld [smem:[#allocation0]]
  $region53: #{tpu_custom_call.1} parent=0
    _
  %s6 = ssub.s32 1, %s4
  %s7 = scalar_select 0, %s6, %s4
  $region1: #{tpu_custom_call.1} parent=0
    #allocation4 [shape = 'u8[32768]{0}', space=vmem, size = 0x8000, scoped, tag = 'input window, operand 0']
    #allocation5 [shape = 's32[2]{0}', space=sflag, size = 0x8, scoped, tag = 'scoped memory for tpu_custom_call.1']
    #allocation6 [shape = 's32[2]{0}', space=sflag, size = 0x8, scoped, tag = 'scoped memory for tpu_custom_call.1']
    #allocation7 [shape = 'u8[393216]{0}', space=vmem, size = 0x60000, scoped, tag = 'input window, operand 1, single buffered']
    #allocation8 [shape = 's32[1]{0}', space=sflag, size = 0x4, scoped, tag = 'scoped memory for tpu_custom_call.1']
    #allocation9 [shape = 'u8[32768]{0}', space=vmem, size = 0x8000, scoped, tag = 'output window, operand 0']
    %8 = vsyncpa [#allocation5], 0
    %s9 = scalar_lea.sflag [#allocation5], 1
    %10 = vsyncpa %s9, 0
    %11 = vsyncpa [#allocation8], 0
    %12 = vsyncpa [#allocation6], 0
    %s13 = scalar_lea.sflag [#allocation6], 1
    %14 = vsyncpa %s13, 0
    loop: start=0, step=1, limit=4
    $region2: #{tpu_custom_call.1} parent=1 // loop_pre_header
      _
    $region3: #{tpu_custom_call.1} parent=1 // loop_header
      %s16 = sphi 0, %s20
      %p17 = scmp.ge.s32.totalorder %s16, 4
      %s26 = sphi 0, %s28
      %s29 = sphi 0, %s26
      %s30 = sphi 0, %s29
      %s46 = sphi 0, %s30
      %s50 = sphi 0, %s50
      %s52 = sphi 0, %s50
      %s53 = sphi 0, %s52
      %s67 = sphi 0, %s53
      %s71 = sphi 0, %s71
      %s73 = sphi 0, %s71
      %s74 = sphi 0, %s73
      %s88 = sphi 0, %s74
      %s94 = sphi 0, %s96
      %s97 = sphi 0, %s94
      %s98 = sphi 0, %s97
      %s114 = sphi 0, %s98
    $region4: #{tpu_custom_call.1} parent=1 // loop_header_branch
      %19 = sbr.rel (%p17) target = $region8
    $region5: #{tpu_custom_call.1} parent=1 // loop_body
      %s21 = ssub.s32 %s16, 1
      %s22 = ssub.s32 %s16, 2
      %s23 = sadd.s32 %s16, 1
      %s24 = ssub.s32 %s16, %s23
      %p25 = scmp.eq.s32.totalorder %s24, 0
      %s27 = sadd.s32 %s26, 1
      %s28 = scalar_select %p25, %s26, %s27
      %p31 = pneg %p25
      %p32 = scmp.eq.s32.totalorder %s16, 1
      %p33 = por %p31, %p32
      %p34 = scmp.ne.s32.totalorder %s26, %s29
      %p35 = scmp.eq.s32.totalorder %s16, 0
      %p36 = por %p34, %p35
      %p37 = scmp.ne.s32.totalorder %s26, %s29
      %p38 = scmp.eq.s32.totalorder %s21, 1
      %p39 = por %p37, %p38
      %p40 = scmp.ne.s32.totalorder %s29, %s30
      %p41 = scmp.eq.s32.totalorder %s21, 0
      %p42 = por %p40, %p41
      %p43 = scmp.ne.s32.totalorder %s29, %s30
      %p44 = scmp.eq.s32.totalorder %s22, 1
      %p45 = por %p43, %p44
      %p47 = scmp.ne.s32.totalorder %s30, %s46
      %p48 = scmp.eq.s32.totalorder %s22, 0
      %p49 = por %p47, %p48
      %s51 = sadd.s32 %s50, 1
      %p54 = scmp.eq.s32.totalorder %s16, 1
      %p55 = scmp.ne.s32.totalorder %s50, %s52
      %p56 = scmp.eq.s32.totalorder %s16, 0
      %p57 = por %p55, %p56
      %p58 = scmp.ne.s32.totalorder %s50, %s52
      %p59 = scmp.eq.s32.totalorder %s21, 1
      %p60 = por %p58, %p59
      %p61 = scmp.ne.s32.totalorder %s52, %s53
      %p62 = scmp.eq.s32.totalorder %s21, 0
      %p63 = por %p61, %p62
      %p64 = scmp.ne.s32.totalorder %s52, %s53
      %p65 = scmp.eq.s32.totalorder %s22, 1
      %p66 = por %p64, %p65
      %p68 = scmp.ne.s32.totalorder %s53, %s67
      %p69 = scmp.eq.s32.totalorder %s22, 0
      %p70 = por %p68, %p69
      %s72 = sadd.s32 %s71, 1
      %p75 = scmp.eq.s32.totalorder %s16, 1
      %p76 = scmp.ne.s32.totalorder %s71, %s73
      %p77 = scmp.eq.s32.totalorder %s16, 0
      %p78 = por %p76, %p77
      %p79 = scmp.ne.s32.totalorder %s71, %s73
      %p80 = scmp.eq.s32.totalorder %s21, 1
      %p81 = por %p79, %p80
      %p82 = scmp.ne.s32.totalorder %s73, %s74
      %p83 = scmp.eq.s32.totalorder %s21, 0
      %p84 = por %p82, %p83
      %p85 = scmp.ne.s32.totalorder %s73, %s74
      %p86 = scmp.eq.s32.totalorder %s22, 1
      %p87 = por %p85, %p86
      %p89 = scmp.ne.s32.totalorder %s74, %s88
      %p90 = scmp.eq.s32.totalorder %s22, 0
      %p91 = por %p89, %p90
      %s92 = ssub.s32 %s16, %s23
      %p93 = scmp.eq.s32.totalorder %s92, 0
      %s95 = sadd.s32 %s94, 1
      %s96 = scalar_select %p93, %s94, %s95
      %p99 = pneg %p93
      %p100 = scmp.eq.s32.totalorder %s16, 1
      %p101 = por %p99, %p100
      %p102 = scmp.ne.s32.totalorder %s94, %s97
      %p103 = scmp.eq.s32.totalorder %s16, 0
      %p104 = por %p102, %p103
      %p105 = scmp.ne.s32.totalorder %s94, %s97
      %p106 = scmp.eq.s32.totalorder %s21, 1
      %p107 = por %p105, %p106
      %p108 = scmp.ne.s32.totalorder %s97, %s98
      %p109 = scmp.eq.s32.totalorder %s21, 0
      %p110 = por %p108, %p109
      %p111 = scmp.ne.s32.totalorder %s97, %s98
      %p112 = scmp.eq.s32.totalorder %s22, 1
      %p113 = por %p111, %p112
      %p115 = scmp.ne.s32.totalorder %s98, %s114
      %p116 = scmp.eq.s32.totalorder %s22, 0
      %p117 = por %p115, %p116
      %p118 = scmp.le.s32.totalorder 1, %s16
      %p119 = scmp.lt.s32.totalorder %s16, 3
      %p120 = pnand %p118, %p119
      %p121 = pneg %p120
      // Predicated region
      $region9: #{tpu_custom_call.1} parent=5 // pred_check
        _
      $region10: #{tpu_custom_call.1} parent=5 // pred_check_branch
        %123 = sbr.rel (%p120) target = $region12
      $region11: #{tpu_custom_call.1} parent=5 // pred_region
        %s124 = ssub.s32 %s16, 1
        // Predicated region
        $region13: #{tpu_custom_call.1} parent=11 // pred_check
          %p125 = pneg %p63
        $region14: #{tpu_custom_call.1} parent=11 // pred_check_branch
          %127 = sbr.rel (%p125) target = $region16
        $region15: #{tpu_custom_call.1} parent=11 // pred_region
          %s129 = ssub.s32 12288, 12288
          %130 = vsyncadd [#allocation8], %s129
          %s131 = sshll.u32 [#allocation7], 4
          %s132 = int_to_ptr.vmem [resolvable:$true] %s131
          %137 = dma.hbm_to_vmem [thread:$0]  %s1, 12288, %s132, [#allocation8], 64, 64, 4
        $region16: #{tpu_custom_call.1} parent=11 // pred_fallthru
          _
        // Predicated region
        $region17: #{tpu_custom_call.1} parent=11 // pred_check
          %p138 = pneg %p84
        $region18: #{tpu_custom_call.1} parent=11 // pred_check_branch
          %140 = sbr.rel (%p138) target = $region20
        $region19: #{tpu_custom_call.1} parent=11 // pred_region
          _
        $region20: #{tpu_custom_call.1} parent=11 // pred_fallthru
          _
      $region12: #{tpu_custom_call.1} parent=5 // pred_fallthru
        _
      %p141 = scmp.lt.s32.totalorder %s16, 2
      // Predicated region
      $region21: #{tpu_custom_call.1} parent=5 // pred_check
        %p142 = pneg %p141
      $region22: #{tpu_custom_call.1} parent=5 // pred_check_branch
        %144 = sbr.rel (%p142) target = $region24
      $region23: #{tpu_custom_call.1} parent=5 // pred_region
        // Predicated region
        $region25: #{tpu_custom_call.1} parent=23 // pred_check
          %p145 = pneg %p36
        $region26: #{tpu_custom_call.1} parent=23 // pred_check_branch
          %147 = sbr.rel (%p145) target = $region28
        $region27: #{tpu_custom_call.1} parent=23 // pred_region
          %s148 = sand.u32 %s26, 1
          %s149 = scalar_lea.sflag [#allocation5], %s148
          %s150 = sand.u32 %s26, 1
          %s151 = smul.addr %s150, 32
          %s152 = scalar_lea.vmem [#allocation4], %s151
          %s153 = smul.u32 2, %s16
          %s155 = ssub.s32 512, 512
          %156 = vsyncadd %s149, %s155
          %s157 = smul.addr %s153, 2
          %s158 = smul.addr %s157, 128
          %s159 = scalar_lea.hbm %s0, %s158
          %s160 = sshll.u32 %s152, 4
          %s161 = int_to_ptr.vmem [resolvable:$true] %s160
          %166 = dma.hbm_to_vmem [thread:$0]  %s159, 512, %s161, %s149, 128, 128, 8
        $region28: #{tpu_custom_call.1} parent=23 // pred_fallthru
          _
      $region24: #{tpu_custom_call.1} parent=5 // pred_fallthru
        _
      %p167 = scmp.le.s32.totalorder 1, %s16
      %p168 = scmp.lt.s32.totalorder %s16, 3
      %p169 = pnand %p167, %p168
      %p170 = pneg %p169
      // Predicated region
      $region29: #{tpu_custom_call.1} parent=5 // pred_check
        _
      $region30: #{tpu_custom_call.1} parent=5 // pred_check_branch
        %172 = sbr.rel (%p169) target = $region32
      $region31: #{tpu_custom_call.1} parent=5 // pred_region
        %s173 = ssub.s32 %s16, 1
        %s174 = sand.u32 %s29, 1
        %s175 = scalar_lea.sflag [#allocation5], %s174
        %s176 = sand.u32 %s29, 1
        %s177 = smul.addr %s176, 32
        %s178 = scalar_lea.vmem [#allocation4], %s177
        // Predicated region
        $region33: #{tpu_custom_call.1} parent=31 // pred_check
          %p179 = pneg %p42
        $region34: #{tpu_custom_call.1} parent=31 // pred_check_branch
          %181 = sbr.rel (%p179) target = $region36
        $region35: #{tpu_custom_call.1} parent=31 // pred_region
          %182 = dma.done %s175, 512
        $region36: #{tpu_custom_call.1} parent=31 // pred_fallthru
          _
        // Predicated region
        $region37: #{tpu_custom_call.1} parent=31 // pred_check
          %p183 = pneg %p63
        $region38: #{tpu_custom_call.1} parent=31 // pred_check_branch
          %185 = sbr.rel (%p183) target = $region40
        $region39: #{tpu_custom_call.1} parent=31 // pred_region
          %186 = dma.done [#allocation8], 12288
        $region40: #{tpu_custom_call.1} parent=31 // pred_fallthru
          _
        %s187 = sand.u32 %s29, 1
        %s188 = scalar_lea.sflag [#allocation5], %s187
        %s189 = sand.u32 %s29, 1
        %s190 = smul.addr %s189, 32
        %s191 = scalar_lea.vmem [#allocation4], %s190
        %p192 = pneg %p42
        %p193 = pneg %p39
        %p194 = pneg %p63
        %p195 = pneg %p60
        %p196 = pneg %p84
        %p197 = pneg %p81
        %p198 = pneg %p110
        %p199 = pneg %p107
        %s200 = sand.u32 %s97, 1
        %s201 = scalar_lea.sflag [#allocation6], %s200
        %s202 = sand.u32 %s97, 1
        %s203 = smul.addr %s202, 32
        %s204 = scalar_lea.vmem [#allocation9], %s203
        %s205 = smul.u32 2, %s21
        %s206 = smul.u32 2, %s21
        %208 = vst [vmem:[#allocation2] sm:$0xff] 0.0
        %209 = vst [vmem:[#allocation2 + $0x8] sm:$0xff] 0.0
        %210 = vst [vmem:[#allocation2 + $0x10] sm:$0xff] 0.0
        %211 = vst [vmem:[#allocation2 + $0x18] sm:$0xff] 0.0
        %212 = vst [vmem:[#allocation2 + $0x20] sm:$0xff] 0.0
        %213 = vst [vmem:[#allocation2 + $0x28] sm:$0xff] 0.0
        %214 = vst [vmem:[#allocation2 + $0x30] sm:$0xff] 0.0
        %215 = vst [vmem:[#allocation2 + $0x38] sm:$0xff] 0.0
        %v216 = vld [vmem:[%s178] sm:$0xff]
        %v217 = vld [vmem:[%s178 + $0x8] sm:$0xff]
        %v218 = vld [vmem:[%s178 + $0x10] sm:$0xff]
        %v219 = vld [vmem:[%s178 + $0x18] sm:$0xff]
        %220 = vst [vmem:[#allocation2 + $0x8] sm:$0xff] %v216
        %221 = vst [vmem:[#allocation2 + $0x10] sm:$0xff] %v217
        %222 = vst [vmem:[#allocation2 + $0x28] sm:$0xff] %v218
        %223 = vst [vmem:[#allocation2 + $0x30] sm:$0xff] %v219
        %v224 = vld [vmem:[#allocation2 + $0x7] sm:$0xff]
        %v225 = vld [vmem:[#allocation2 + $0xf] sm:$0xff]
        %v226 = vld [vmem:[#allocation2 + $0x27] sm:$0xff]
        %v227 = vld [vmem:[#allocation2 + $0x2f] sm:$0xff]
        %v228 = vld [vmem:[#allocation2 + $0x8] sm:$0xff]
        %v229 = vld [vmem:[#allocation2 + $0x10] sm:$0xff]
        %v230 = vld [vmem:[#allocation2 + $0x28] sm:$0xff]
        %v231 = vld [vmem:[#allocation2 + $0x30] sm:$0xff]
        %v232 = vld [vmem:[#allocation2 + $0x9] sm:$0xff]
        %v233 = vld [vmem:[#allocation2 + $0x11] sm:$0xff]
        %v234 = vld [vmem:[#allocation2 + $0x29] sm:$0xff]
        %v235 = vld [vmem:[#allocation2 + $0x31] sm:$0xff]
        %v236 = vpack.c.bf16 %v225, %v224
        %v237 = vpack.c.bf16 %v229, %v228
        %v238 = vpack.c.bf16 %v233, %v232
        %v239 = vpack.c.bf16 %v227, %v226
        %v240 = vpack.c.bf16 %v231, %v230
        %v241 = vpack.c.bf16 %v235, %v234
        %v242 = vld [vmem:[#allocation7] sm:$0xf]
        %v243 = vld [vmem:[#allocation7 + $0x4] sm:$0xf]
        %v244 = vld [vmem:[#allocation7 + $0x8] sm:$0xf]
        %v245 = vld [vmem:[#allocation7 + $0xc] sm:$0xf]
        %v246 = vld [vmem:[#allocation7 + $0x10] sm:$0xf]
        %v247 = vld [vmem:[#allocation7 + $0x14] sm:$0xf]
        %v248 = vld [vmem:[#allocation7 + $0x18] sm:$0xf]
        %v249 = vld [vmem:[#allocation7 + $0x1c] sm:$0xf]
        %v250 = vld [vmem:[#allocation7 + $0x20] sm:$0xf]
        %v251 = vld [vmem:[#allocation7 + $0x24] sm:$0xf]
        %v252 = vld [vmem:[#allocation7 + $0x28] sm:$0xf]
        %v253 = vld [vmem:[#allocation7 + $0x2c] sm:$0xf]
        %v254 = vld [vmem:[#allocation7 + $0x30] sm:$0xf]
        %v255 = vld [vmem:[#allocation7 + $0x34] sm:$0xf]
        %v256 = vld [vmem:[#allocation7 + $0x38] sm:$0xf]
        %v257 = vld [vmem:[#allocation7 + $0x3c] sm:$0xf]
        %v258 = vld [vmem:[#allocation7 + $0x40] sm:$0xf]
        %v259 = vld [vmem:[#allocation7 + $0x44] sm:$0xf]
        %v260 = vld [vmem:[#allocation7 + $0x48] sm:$0xf]
        %v261 = vld [vmem:[#allocation7 + $0x4c] sm:$0xf]
        %v262 = vld [vmem:[#allocation7 + $0x50] sm:$0xf]
        %v263 = vld [vmem:[#allocation7 + $0x54] sm:$0xf]
        %v264 = vld [vmem:[#allocation7 + $0x58] sm:$0xf]
        %v265 = vld [vmem:[#allocation7 + $0x5c] sm:$0xf]
        %v266 = vld [vmem:[#allocation7 + $0x60] sm:$0xf]
        %v267 = vld [vmem:[#allocation7 + $0x64] sm:$0xf]
        %v268 = vld [vmem:[#allocation7 + $0x68] sm:$0xf]
        %v269 = vld [vmem:[#allocation7 + $0x6c] sm:$0xf]
        %v270 = vld [vmem:[#allocation7 + $0x70] sm:$0xf]
        %v271 = vld [vmem:[#allocation7 + $0x74] sm:$0xf]
        %v272 = vld [vmem:[#allocation7 + $0x78] sm:$0xf]
        %v273 = vld [vmem:[#allocation7 + $0x7c] sm:$0xf]
        %v274 = vld [vmem:[#allocation7 + $0x80] sm:$0xf]
        %v275 = vld [vmem:[#allocation7 + $0x84] sm:$0xf]
        %v276 = vld [vmem:[#allocation7 + $0x88] sm:$0xf]
        %v277 = vld [vmem:[#allocation7 + $0x8c] sm:$0xf]
        %v278 = vld [vmem:[#allocation7 + $0x90] sm:$0xf]
        %v279 = vld [vmem:[#allocation7 + $0x94] sm:$0xf]
        %v280 = vld [vmem:[#allocation7 + $0x98] sm:$0xf]
        %v281 = vld [vmem:[#allocation7 + $0x9c] sm:$0xf]
        %v282 = vld [vmem:[#allocation7 + $0xa0] sm:$0xf]
        %v283 = vld [vmem:[#allocation7 + $0xa4] sm:$0xf]
        %v284 = vld [vmem:[#allocation7 + $0xa8] sm:$0xf]
        %v285 = vld [vmem:[#allocation7 + $0xac] sm:$0xf]
        %v286 = vld [vmem:[#allocation7 + $0xb0] sm:$0xf]
        %v287 = vld [vmem:[#allocation7 + $0xb4] sm:$0xf]
        %v288 = vld [vmem:[#allocation7 + $0xb8] sm:$0xf]
        %v289 = vld [vmem:[#allocation7 + $0xbc] sm:$0xf]
        %v290 = vld [vmem:[%s2] sm:$0x1]
        %v292 = vlaneseq
        %v293 = vshrl.u32 %v292, 7
        %v294 = vsub.s32 0, %v293
        %v295 = vrot.slane %v290, %v294
        %v345 = vunpack.c.l.b16 %v242
        %v346 = vunpack.c.l.b16 %v243
        %v347 = vunpack.c.l.b16 %v244
        %v348 = vunpack.c.l.b16 %v245
        %v349 = vunpack.c.l.b16 %v246
        %v350 = vunpack.c.l.b16 %v247
        %v351 = vunpack.c.l.b16 %v248
        %v352 = vunpack.c.l.b16 %v249
        %v353 = vunpack.c.l.b16 %v250
        %v354 = vunpack.c.l.b16 %v251
        %v355 = vunpack.c.l.b16 %v252
        %v356 = vunpack.c.l.b16 %v253
        %v357 = vunpack.c.l.b16 %v254
        %v358 = vunpack.c.l.b16 %v255
        %v359 = vunpack.c.l.b16 %v256
        %v360 = vunpack.c.l.b16 %v257
        %v361 = vunpack.c.l.b16 %v258
        %v362 = vunpack.c.l.b16 %v259
        %v363 = vunpack.c.l.b16 %v260
        %v364 = vunpack.c.l.b16 %v261
        %v365 = vunpack.c.l.b16 %v262
        %v366 = vunpack.c.l.b16 %v263
        %v367 = vunpack.c.l.b16 %v264
        %v368 = vunpack.c.l.b16 %v265
        %v369 = vunpack.c.l.b16 %v266
        %v370 = vunpack.c.l.b16 %v267
        %v371 = vunpack.c.l.b16 %v268
        %v372 = vunpack.c.l.b16 %v269
        %v373 = vunpack.c.l.b16 %v270
        %v374 = vunpack.c.l.b16 %v271
        %v375 = vunpack.c.l.b16 %v272
        %v376 = vunpack.c.l.b16 %v273
        %v377 = vunpack.c.l.b16 %v274
        %v378 = vunpack.c.l.b16 %v275
        %v379 = vunpack.c.l.b16 %v276
        %v380 = vunpack.c.l.b16 %v277
        %v381 = vunpack.c.l.b16 %v278
        %v382 = vunpack.c.l.b16 %v279
        %v383 = vunpack.c.l.b16 %v280
        %v384 = vunpack.c.l.b16 %v281
        %v385 = vunpack.c.l.b16 %v282
        %v386 = vunpack.c.l.b16 %v283
        %v387 = vunpack.c.l.b16 %v284
        %v388 = vunpack.c.l.b16 %v285
        %v389 = vunpack.c.l.b16 %v286
        %v390 = vunpack.c.l.b16 %v287
        %v391 = vunpack.c.l.b16 %v288
        %v392 = vunpack.c.l.b16 %v289
        %v393 = vpack.c.b16 %v346, %v345
        %v394 = vpack.c.b16 %v348, %v347
        %v395 = vpack.c.b16 %v350, %v349
        %v396 = vpack.c.b16 %v352, %v351
        %v397 = vpack.c.b16 %v354, %v353
        %v398 = vpack.c.b16 %v356, %v355
        %v399 = vpack.c.b16 %v358, %v357
        %v400 = vpack.c.b16 %v360, %v359
        %v401 = vpack.c.b16 %v362, %v361
        %v402 = vpack.c.b16 %v364, %v363
        %v403 = vpack.c.b16 %v366, %v365
        %v404 = vpack.c.b16 %v368, %v367
        %v405 = vpack.c.b16 %v370, %v369
        %v406 = vpack.c.b16 %v372, %v371
        %v407 = vpack.c.b16 %v374, %v373
        %v408 = vpack.c.b16 %v376, %v375
        %v409 = vpack.c.b16 %v378, %v377
        %v410 = vpack.c.b16 %v380, %v379
        %v411 = vpack.c.b16 %v382, %v381
        %v412 = vpack.c.b16 %v384, %v383
        %v413 = vpack.c.b16 %v386, %v385
        %v414 = vpack.c.b16 %v388, %v387
        %v415 = vpack.c.b16 %v390, %v389
        %v416 = vpack.c.b16 %v392, %v391
        %441 = vmatprep.subr.bf16.mxu0 0
        %442 = vmatpush1.bf16.msra.mxu0 %v393
        %443 = vmatprep.subr.bf16.mxu0 0
        %444 = vmatpush1.bf16.msra.mxu0 %v394
        %445 = vmatprep.subr.bf16.mxu0 0
        %446 = vmatpush1.bf16.msra.mxu0 %v395
        %447 = vmatprep.subr.bf16.mxu0 0
        %448 = vmatpush1.bf16.msra.mxu0 %v396
        %449 = vmatprep.subr.bf16.mxu0 0
        %450 = vmatpush1.bf16.msra.mxu0 %v397
        %451 = vmatprep.subr.bf16.mxu0 0
        %452 = vmatpush1.bf16.msra.mxu0 %v398
        %453 = vmatprep.subr.bf16.mxu0 0
        %454 = vmatpush1.bf16.msra.mxu0 %v399
        %455 = vmatprep.subr.bf16.mxu0 0
        %456 = vmatpush1.bf16.msra.mxu0 %v400
        %457 = vmatprep.subr.bf16.mxu0 0
        %458 = vmatpush1.bf16.msra.mxu0 %v401
        %459 = vmatprep.subr.bf16.mxu0 0
        %460 = vmatpush1.bf16.msra.mxu0 %v402
        %461 = vmatprep.subr.bf16.mxu0 0
        %462 = vmatpush1.bf16.msra.mxu0 %v403
        %463 = vmatprep.subr.bf16.mxu0 0
        %464 = vmatpush1.bf16.msra.mxu0 %v404
        %465 = vmatprep.subr.bf16.mxu0 0
        %466 = vmatpush1.bf16.msra.mxu0 %v405
        %467 = vmatprep.subr.bf16.mxu0 0
        %468 = vmatpush1.bf16.msra.mxu0 %v406
        %469 = vmatprep.subr.bf16.mxu0 0
        %470 = vmatpush1.bf16.msra.mxu0 %v407
        %471 = vmatprep.subr.bf16.mxu0 0
        %472 = vmatpush1.bf16.msra.mxu0 %v408
        %473 = vmatprep.mubr.bf16.mxu0 %v237
        %474 = vmatmul.mubr.bf16.gmra.mrb[0].mxu0 %v236
        %v475 = vpop.f32.mrb[0].mxu0
        %v476 = vadd.f32 %v295, %v475
        %v477 = vpop.f32.mrb[0].mxu0
        %v478 = vpop.f32.mrb[0].mxu0
        %v479 = vadd.f32 %v295, %v478
        %v480 = vpop.f32.mrb[0].mxu0
        %481 = vmatprep.mubr.bf16.mxu0 %v240
        %482 = vmatmul.mubr.bf16.gmra.mrb[0].mxu0 %v239
        %v483 = vpop.f32.mrb[0].mxu0
        %v484 = vadd.f32 %v295, %v483
        %v485 = vpop.f32.mrb[0].mxu0
        %v486 = vpop.f32.mrb[0].mxu0
        %v487 = vadd.f32 %v295, %v486
        %v488 = vpop.f32.mrb[0].mxu0
        %489 = vdwg.mxu0
        %490 = vmatprep.subr.bf16.mxu0 0
        %491 = vmatpush1.bf16.msra.mxu0 %v409
        %492 = vmatprep.subr.bf16.mxu0 0
        %493 = vmatpush1.bf16.msra.mxu0 %v410
        %494 = vmatprep.subr.bf16.mxu0 0
        %495 = vmatpush1.bf16.msra.mxu0 %v411
        %496 = vmatprep.subr.bf16.mxu0 0
        %497 = vmatpush1.bf16.msra.mxu0 %v412
        %498 = vmatprep.subr.bf16.mxu0 0
        %499 = vmatpush1.bf16.msra.mxu0 %v413
        %500 = vmatprep.subr.bf16.mxu0 0
        %501 = vmatpush1.bf16.msra.mxu0 %v414
        %502 = vmatprep.subr.bf16.mxu0 0
        %503 = vmatpush1.bf16.msra.mxu0 %v415
        %504 = vmatprep.subr.bf16.mxu0 0
        %505 = vmatpush1.bf16.msra.mxu0 %v416
        %506 = vmatprep.subr.bf16.mxu0 0
        %507 = vmatpush1.bf16.msra.mxu0 0
        %508 = vmatprep.subr.bf16.mxu0 0
        %509 = vmatpush1.bf16.msra.mxu0 0
        %510 = vmatprep.subr.bf16.mxu0 0
        %511 = vmatpush1.bf16.msra.mxu0 0
        %512 = vmatprep.subr.bf16.mxu0 0
        %513 = vmatpush1.bf16.msra.mxu0 0
        %514 = vmatprep.subr.bf16.mxu0 0
        %515 = vmatpush1.bf16.msra.mxu0 0
        %516 = vmatprep.subr.bf16.mxu0 0
        %517 = vmatpush1.bf16.msra.mxu0 0
        %518 = vmatprep.subr.bf16.mxu0 0
        %519 = vmatpush1.bf16.msra.mxu0 0
        %520 = vmatprep.subr.bf16.mxu0 0
        %521 = vmatpush1.bf16.msra.mxu0 0
        %522 = vmatprep.mubr.bf16.mxu0 0
        %523 = vmatmul.mubr.bf16.gmra.mrb[0].mxu0 %v238
        %v524 = vpop.f32.mrb[0].mxu0
        %v525 = vadd.f32 %v476, %v524
        %v526 = vpop.f32.mrb[0].mxu0
        %v527 = vpop.f32.mrb[0].mxu0
        %v528 = vadd.f32 %v479, %v527
        %v529 = vpop.f32.mrb[0].mxu0
        %530 = vmatprep.mubr.bf16.mxu0 0
        %531 = vmatmul.mubr.bf16.gmra.mrb[0].mxu0 %v241
        %v532 = vpop.f32.mrb[0].mxu0
        %v533 = vadd.f32 %v484, %v532
        %v534 = vpop.f32.mrb[0].mxu0
        %v535 = vpop.f32.mrb[0].mxu0
        %v536 = vadd.f32 %v487, %v535
        %v537 = vpop.f32.mrb[0].mxu0
        %538 = vdwg.mxu0
        %v539 = vmax.f32 %v525, 0.0
        %v540 = vmax.f32 %v528, 0.0
        %v541 = vmax.f32 %v533, 0.0
        %v542 = vmax.f32 %v536, 0.0
        %543 = vst [vmem:[#allocation3] sm:$0xff] %v539
        %544 = vst [vmem:[#allocation3 + $0x8] sm:$0xff] %v540
        %545 = vst [vmem:[#allocation3 + $0x10] sm:$0xff] %v541
        %546 = vst [vmem:[#allocation3 + $0x18] sm:$0xff] %v542
        %547 = vst [vmem:[#allocation2 + $0x8] sm:$0xff] %v539
        %548 = vst [vmem:[#allocation2 + $0x10] sm:$0xff] %v540
        %549 = vst [vmem:[#allocation2 + $0x28] sm:$0xff] %v541
        %550 = vst [vmem:[#allocation2 + $0x30] sm:$0xff] %v542
        %v551 = vld [vmem:[#allocation2 + $0x6] sm:$0xff]
        %v552 = vld [vmem:[#allocation2 + $0xe] sm:$0xff]
        %v553 = vld [vmem:[#allocation2 + $0x26] sm:$0xff]
        %v554 = vld [vmem:[#allocation2 + $0x2e] sm:$0xff]
        %v555 = vld [vmem:[#allocation2 + $0x8] sm:$0xff]
        %v556 = vld [vmem:[#allocation2 + $0x10] sm:$0xff]
        %v557 = vld [vmem:[#allocation2 + $0x28] sm:$0xff]
        %v558 = vld [vmem:[#allocation2 + $0x30] sm:$0xff]
        %v559 = vld [vmem:[#allocation2 + $0xa] sm:$0xff]
        %v560 = vld [vmem:[#allocation2 + $0x12] sm:$0xff]
        %v561 = vld [vmem:[#allocation2 + $0x2a] sm:$0xff]
        %v562 = vld [vmem:[#allocation2 + $0x32] sm:$0xff]
        %v563 = vpack.c.bf16 %v552, %v551
        %v564 = vpack.c.bf16 %v556, %v555
        %v565 = vpack.c.bf16 %v560, %v559
        %v566 = vpack.c.bf16 %v554, %v553
        %v567 = vpack.c.bf16 %v558, %v557
        %v568 = vpack.c.bf16 %v562, %v561
        %s569 = scalar_lea.vmem [#allocation7], 192
        %v570 = vld [vmem:[%s569] sm:$0xf]
        %v571 = vld [vmem:[%s569 + $0x4] sm:$0xf]
        %v572 = vld [vmem:[%s569 + $0x8] sm:$0xf]
        %v573 = vld [vmem:[%s569 + $0xc] sm:$0xf]
        %v574 = vld [vmem:[%s569 + $0x10] sm:$0xf]
        %v575 = vld [vmem:[%s569 + $0x14] sm:$0xf]
        %v576 = vld [vmem:[%s569 + $0x18] sm:$0xf]
        %v577 = vld [vmem:[%s569 + $0x1c] sm:$0xf]
        %v578 = vld [vmem:[%s569 + $0x20] sm:$0xf]
        %v579 = vld [vmem:[%s569 + $0x24] sm:$0xf]
        %v580 = vld [vmem:[%s569 + $0x28] sm:$0xf]
        %v581 = vld [vmem:[%s569 + $0x2c] sm:$0xf]
        %v582 = vld [vmem:[%s569 + $0x30] sm:$0xf]
        %v583 = vld [vmem:[%s569 + $0x34] sm:$0xf]
        %v584 = vld [vmem:[%s569 + $0x38] sm:$0xf]
        %v585 = vld [vmem:[%s569 + $0x3c] sm:$0xf]
        %v586 = vld [vmem:[%s569 + $0x40] sm:$0xf]
        %v587 = vld [vmem:[%s569 + $0x44] sm:$0xf]
        %v588 = vld [vmem:[%s569 + $0x48] sm:$0xf]
        %v589 = vld [vmem:[%s569 + $0x4c] sm:$0xf]
        %v590 = vld [vmem:[%s569 + $0x50] sm:$0xf]
        %v591 = vld [vmem:[%s569 + $0x54] sm:$0xf]
        %v592 = vld [vmem:[%s569 + $0x58] sm:$0xf]
        %v593 = vld [vmem:[%s569 + $0x5c] sm:$0xf]
        %v594 = vld [vmem:[%s569 + $0x60] sm:$0xf]
        %v595 = vld [vmem:[%s569 + $0x64] sm:$0xf]
        %v596 = vld [vmem:[%s569 + $0x68] sm:$0xf]
        %v597 = vld [vmem:[%s569 + $0x6c] sm:$0xf]
        %v598 = vld [vmem:[%s569 + $0x70] sm:$0xf]
        %v599 = vld [vmem:[%s569 + $0x74] sm:$0xf]
        %v600 = vld [vmem:[%s569 + $0x78] sm:$0xf]
        %v601 = vld [vmem:[%s569 + $0x7c] sm:$0xf]
        %v602 = vld [vmem:[%s569 + $0x80] sm:$0xf]
        %v603 = vld [vmem:[%s569 + $0x84] sm:$0xf]
        %v604 = vld [vmem:[%s569 + $0x88] sm:$0xf]
        %v605 = vld [vmem:[%s569 + $0x8c] sm:$0xf]
        %v606 = vld [vmem:[%s569 + $0x90] sm:$0xf]
        %v607 = vld [vmem:[%s569 + $0x94] sm:$0xf]
        %v608 = vld [vmem:[%s569 + $0x98] sm:$0xf]
        %v609 = vld [vmem:[%s569 + $0x9c] sm:$0xf]
        %v610 = vld [vmem:[%s569 + $0xa0] sm:$0xf]
        %v611 = vld [vmem:[%s569 + $0xa4] sm:$0xf]
        %v612 = vld [vmem:[%s569 + $0xa8] sm:$0xf]
        %v613 = vld [vmem:[%s569 + $0xac] sm:$0xf]
        %v614 = vld [vmem:[%s569 + $0xb0] sm:$0xf]
        %v615 = vld [vmem:[%s569 + $0xb4] sm:$0xf]
        %v616 = vld [vmem:[%s569 + $0xb8] sm:$0xf]
        %v617 = vld [vmem:[%s569 + $0xbc] sm:$0xf]
        %s618 = scalar_lea.vmem %s2, 1
        %v619 = vld [vmem:[%s618] sm:$0x1]
        %v621 = vlaneseq
        %v622 = vshrl.u32 %v621, 7
        %v623 = vsub.s32 0, %v622
        %v624 = vrot.slane %v619, %v623
        %v674 = vunpack.c.l.b16 %v570
        %v675 = vunpack.c.l.b16 %v571
        %v676 = vunpack.c.l.b16 %v572
        %v677 = vunpack.c.l.b16 %v573
        %v678 = vunpack.c.l.b16 %v574
        %v679 = vunpack.c.l.b16 %v575
        %v680 = vunpack.c.l.b16 %v576
        %v681 = vunpack.c.l.b16 %v577
        %v682 = vunpack.c.l.b16 %v578
        %v683 = vunpack.c.l.b16 %v579
        %v684 = vunpack.c.l.b16 %v580
        %v685 = vunpack.c.l.b16 %v581
        %v686 = vunpack.c.l.b16 %v582
        %v687 = vunpack.c.l.b16 %v583
        %v688 = vunpack.c.l.b16 %v584
        %v689 = vunpack.c.l.b16 %v585
        %v690 = vunpack.c.l.b16 %v586
        %v691 = vunpack.c.l.b16 %v587
        %v692 = vunpack.c.l.b16 %v588
        %v693 = vunpack.c.l.b16 %v589
        %v694 = vunpack.c.l.b16 %v590
        %v695 = vunpack.c.l.b16 %v591
        %v696 = vunpack.c.l.b16 %v592
        %v697 = vunpack.c.l.b16 %v593
        %v698 = vunpack.c.l.b16 %v594
        %v699 = vunpack.c.l.b16 %v595
        %v700 = vunpack.c.l.b16 %v596
        %v701 = vunpack.c.l.b16 %v597
        %v702 = vunpack.c.l.b16 %v598
        %v703 = vunpack.c.l.b16 %v599
        %v704 = vunpack.c.l.b16 %v600
        %v705 = vunpack.c.l.b16 %v601
        %v706 = vunpack.c.l.b16 %v602
        %v707 = vunpack.c.l.b16 %v603
        %v708 = vunpack.c.l.b16 %v604
        %v709 = vunpack.c.l.b16 %v605
        %v710 = vunpack.c.l.b16 %v606
        %v711 = vunpack.c.l.b16 %v607
        %v712 = vunpack.c.l.b16 %v608
        %v713 = vunpack.c.l.b16 %v609
        %v714 = vunpack.c.l.b16 %v610
        %v715 = vunpack.c.l.b16 %v611
        %v716 = vunpack.c.l.b16 %v612
        %v717 = vunpack.c.l.b16 %v613
        %v718 = vunpack.c.l.b16 %v614
        %v719 = vunpack.c.l.b16 %v615
        %v720 = vunpack.c.l.b16 %v616
        %v721 = vunpack.c.l.b16 %v617
        %v722 = vpack.c.b16 %v675, %v674
        %v723 = vpack.c.b16 %v677, %v676
        %v724 = vpack.c.b16 %v679, %v678
        %v725 = vpack.c.b16 %v681, %v680
        %v726 = vpack.c.b16 %v683, %v682
        %v727 = vpack.c.b16 %v685, %v684
        %v728 = vpack.c.b16 %v687, %v686
        %v729 = vpack.c.b16 %v689, %v688
        %v730 = vpack.c.b16 %v691, %v690
        %v731 = vpack.c.b16 %v693, %v692
        %v732 = vpack.c.b16 %v695, %v694
        %v733 = vpack.c.b16 %v697, %v696
        %v734 = vpack.c.b16 %v699, %v698
        %v735 = vpack.c.b16 %v701, %v700
        %v736 = vpack.c.b16 %v703, %v702
        %v737 = vpack.c.b16 %v705, %v704
        %v738 = vpack.c.b16 %v707, %v706
        %v739 = vpack.c.b16 %v709, %v708
        %v740 = vpack.c.b16 %v711, %v710
        %v741 = vpack.c.b16 %v713, %v712
        %v742 = vpack.c.b16 %v715, %v714
        %v743 = vpack.c.b16 %v717, %v716
        %v744 = vpack.c.b16 %v719, %v718
        %v745 = vpack.c.b16 %v721, %v720
        %770 = vmatprep.subr.bf16.mxu0 0
        %771 = vmatpush1.bf16.msra.mxu0 %v722
        %772 = vmatprep.subr.bf16.mxu0 0
        %773 = vmatpush1.bf16.msra.mxu0 %v723
        %774 = vmatprep.subr.bf16.mxu0 0
        %775 = vmatpush1.bf16.msra.mxu0 %v724
        %776 = vmatprep.subr.bf16.mxu0 0
        %777 = vmatpush1.bf16.msra.mxu0 %v725
        %778 = vmatprep.subr.bf16.mxu0 0
        %779 = vmatpush1.bf16.msra.mxu0 %v726
        %780 = vmatprep.subr.bf16.mxu0 0
        %781 = vmatpush1.bf16.msra.mxu0 %v727
        %782 = vmatprep.subr.bf16.mxu0 0
        %783 = vmatpush1.bf16.msra.mxu0 %v728
        %784 = vmatprep.subr.bf16.mxu0 0
        %785 = vmatpush1.bf16.msra.mxu0 %v729
        %786 = vmatprep.subr.bf16.mxu0 0
        %787 = vmatpush1.bf16.msra.mxu0 %v730
        %788 = vmatprep.subr.bf16.mxu0 0
        %789 = vmatpush1.bf16.msra.mxu0 %v731
        %790 = vmatprep.subr.bf16.mxu0 0
        %791 = vmatpush1.bf16.msra.mxu0 %v732
        %792 = vmatprep.subr.bf16.mxu0 0
        %793 = vmatpush1.bf16.msra.mxu0 %v733
        %794 = vmatprep.subr.bf16.mxu0 0
        %795 = vmatpush1.bf16.msra.mxu0 %v734
        %796 = vmatprep.subr.bf16.mxu0 0
        %797 = vmatpush1.bf16.msra.mxu0 %v735
        %798 = vmatprep.subr.bf16.mxu0 0
        %799 = vmatpush1.bf16.msra.mxu0 %v736
        %800 = vmatprep.subr.bf16.mxu0 0
        %801 = vmatpush1.bf16.msra.mxu0 %v737
        %802 = vmatprep.mubr.bf16.mxu0 %v564
        %803 = vmatmul.mubr.bf16.gmra.mrb[0].mxu0 %v563
        %v804 = vpop.f32.mrb[0].mxu0
        %v805 = vadd.f32 %v624, %v804
        %v806 = vpop.f32.mrb[0].mxu0
        %v807 = vpop.f32.mrb[0].mxu0
        %v808 = vadd.f32 %v624, %v807
        %v809 = vpop.f32.mrb[0].mxu0
        %810 = vmatprep.mubr.bf16.mxu0 %v567
        %811 = vmatmul.mubr.bf16.gmra.mrb[0].mxu0 %v566
        %v812 = vpop.f32.mrb[0].mxu0
        %v813 = vadd.f32 %v624, %v812
        %v814 = vpop.f32.mrb[0].mxu0
        %v815 = vpop.f32.mrb[0].mxu0
        %v816 = vadd.f32 %v624, %v815
        %v817 = vpop.f32.mrb[0].mxu0
        %818 = vdwg.mxu0
        %819 = vmatprep.subr.bf16.mxu0 0
        %820 = vmatpush1.bf16.msra.mxu0 %v738
        %821 = vmatprep.subr.bf16.mxu0 0
        %822 = vmatpush1.bf16.msra.mxu0 %v739
        %823 = vmatprep.subr.bf16.mxu0 0
        %824 = vmatpush1.bf16.msra.mxu0 %v740
        %825 = vmatprep.subr.bf16.mxu0 0
        %826 = vmatpush1.bf16.msra.mxu0 %v741
        %827 = vmatprep.subr.bf16.mxu0 0
        %828 = vmatpush1.bf16.msra.mxu0 %v742
        %829 = vmatprep.subr.bf16.mxu0 0
        %830 = vmatpush1.bf16.msra.mxu0 %v743
        %831 = vmatprep.subr.bf16.mxu0 0
        %832 = vmatpush1.bf16.msra.mxu0 %v744
        %833 = vmatprep.subr.bf16.mxu0 0
        %834 = vmatpush1.bf16.msra.mxu0 %v745
        %835 = vmatprep.subr.bf16.mxu0 0
        %836 = vmatpush1.bf16.msra.mxu0 0
        %837 = vmatprep.subr.bf16.mxu0 0
        %838 = vmatpush1.bf16.msra.mxu0 0
        %839 = vmatprep.subr.bf16.mxu0 0
        %840 = vmatpush1.bf16.msra.mxu0 0
        %841 = vmatprep.subr.bf16.mxu0 0
        %842 = vmatpush1.bf16.msra.mxu0 0
        %843 = vmatprep.subr.bf16.mxu0 0
        %844 = vmatpush1.bf16.msra.mxu0 0
        %845 = vmatprep.subr.bf16.mxu0 0
        %846 = vmatpush1.bf16.msra.mxu0 0
        %847 = vmatprep.subr.bf16.mxu0 0
        %848 = vmatpush1.bf16.msra.mxu0 0
        %849 = vmatprep.subr.bf16.mxu0 0
        %850 = vmatpush1.bf16.msra.mxu0 0
        %851 = vmatprep.mubr.bf16.mxu0 0
        %852 = vmatmul.mubr.bf16.gmra.mrb[0].mxu0 %v565
        %v853 = vpop.f32.mrb[0].mxu0
        %v854 = vadd.f32 %v805, %v853
        %v855 = vpop.f32.mrb[0].mxu0
        %v856 = vpop.f32.mrb[0].mxu0
        %v857 = vadd.f32 %v808, %v856
        %v858 = vpop.f32.mrb[0].mxu0
        %859 = vmatprep.mubr.bf16.mxu0 0
        %860 = vmatmul.mubr.bf16.gmra.mrb[0].mxu0 %v568
        %v861 = vpop.f32.mrb[0].mxu0
        %v862 = vadd.f32 %v813, %v861
        %v863 = vpop.f32.mrb[0].mxu0
        %v864 = vpop.f32.mrb[0].mxu0
        %v865 = vadd.f32 %v816, %v864
        %v866 = vpop.f32.mrb[0].mxu0
        %867 = vdwg.mxu0
        %v868 = vmax.f32 %v854, 0.0
        %v869 = vmax.f32 %v857, 0.0
        %v870 = vmax.f32 %v862, 0.0
        %v871 = vmax.f32 %v865, 0.0
        %872 = vst [vmem:[#allocation2 + $0x8] sm:$0xff] %v868
        %873 = vst [vmem:[#allocation2 + $0x10] sm:$0xff] %v869
        %874 = vst [vmem:[#allocation2 + $0x28] sm:$0xff] %v870
        %875 = vst [vmem:[#allocation2 + $0x30] sm:$0xff] %v871
        %v876 = vld [vmem:[#allocation2 + $0x4] sm:$0xff]
        %v877 = vld [vmem:[#allocation2 + $0xc] sm:$0xff]
        %v878 = vld [vmem:[#allocation2 + $0x24] sm:$0xff]
        %v879 = vld [vmem:[#allocation2 + $0x2c] sm:$0xff]
        %v880 = vld [vmem:[#allocation2 + $0x8] sm:$0xff]
        %v881 = vld [vmem:[#allocation2 + $0x10] sm:$0xff]
        %v882 = vld [vmem:[#allocation2 + $0x28] sm:$0xff]
        %v883 = vld [vmem:[#allocation2 + $0x30] sm:$0xff]
        %v884 = vld [vmem:[#allocation2 + $0x14] sm:$0xff]
        %v885 = vld [vmem:[#allocation2 + $0x34] sm:$0xff]
        %v886 = vpack.c.bf16 %v877, %v876
        %v887 = vpack.c.bf16 %v881, %v880
        %v888 = vpack.c.bf16 %v884, %v877
        %v889 = vpack.c.bf16 %v879, %v878
        %v890 = vpack.c.bf16 %v883, %v882
        %v891 = vpack.c.bf16 %v885, %v879
        %s892 = scalar_lea.vmem [#allocation7], 384
        %v893 = vld [vmem:[%s892] sm:$0xf]
        %v894 = vld [vmem:[%s892 + $0x4] sm:$0xf]
        %v895 = vld [vmem:[%s892 + $0x8] sm:$0xf]
        %v896 = vld [vmem:[%s892 + $0xc] sm:$0xf]
        %v897 = vld [vmem:[%s892 + $0x10] sm:$0xf]
        %v898 = vld [vmem:[%s892 + $0x14] sm:$0xf]
        %v899 = vld [vmem:[%s892 + $0x18] sm:$0xf]
        %v900 = vld [vmem:[%s892 + $0x1c] sm:$0xf]
        %v901 = vld [vmem:[%s892 + $0x20] sm:$0xf]
        %v902 = vld [vmem:[%s892 + $0x24] sm:$0xf]
        %v903 = vld [vmem:[%s892 + $0x28] sm:$0xf]
        %v904 = vld [vmem:[%s892 + $0x2c] sm:$0xf]
        %v905 = vld [vmem:[%s892 + $0x30] sm:$0xf]
        %v906 = vld [vmem:[%s892 + $0x34] sm:$0xf]
        %v907 = vld [vmem:[%s892 + $0x38] sm:$0xf]
        %v908 = vld [vmem:[%s892 + $0x3c] sm:$0xf]
        %v909 = vld [vmem:[%s892 + $0x40] sm:$0xf]
        %v910 = vld [vmem:[%s892 + $0x44] sm:$0xf]
        %v911 = vld [vmem:[%s892 + $0x48] sm:$0xf]
        %v912 = vld [vmem:[%s892 + $0x4c] sm:$0xf]
        %v913 = vld [vmem:[%s892 + $0x50] sm:$0xf]
        %v914 = vld [vmem:[%s892 + $0x54] sm:$0xf]
        %v915 = vld [vmem:[%s892 + $0x58] sm:$0xf]
        %v916 = vld [vmem:[%s892 + $0x5c] sm:$0xf]
        %v917 = vld [vmem:[%s892 + $0x60] sm:$0xf]
        %v918 = vld [vmem:[%s892 + $0x64] sm:$0xf]
        %v919 = vld [vmem:[%s892 + $0x68] sm:$0xf]
        %v920 = vld [vmem:[%s892 + $0x6c] sm:$0xf]
        %v921 = vld [vmem:[%s892 + $0x70] sm:$0xf]
        %v922 = vld [vmem:[%s892 + $0x74] sm:$0xf]
        %v923 = vld [vmem:[%s892 + $0x78] sm:$0xf]
        %v924 = vld [vmem:[%s892 + $0x7c] sm:$0xf]
        %v925 = vld [vmem:[%s892 + $0x80] sm:$0xf]
        %v926 = vld [vmem:[%s892 + $0x84] sm:$0xf]
        %v927 = vld [vmem:[%s892 + $0x88] sm:$0xf]
        %v928 = vld [vmem:[%s892 + $0x8c] sm:$0xf]
        %v929 = vld [vmem:[%s892 + $0x90] sm:$0xf]
        %v930 = vld [vmem:[%s892 + $0x94] sm:$0xf]
        %v931 = vld [vmem:[%s892 + $0x98] sm:$0xf]
        %v932 = vld [vmem:[%s892 + $0x9c] sm:$0xf]
        %v933 = vld [vmem:[%s892 + $0xa0] sm:$0xf]
        %v934 = vld [vmem:[%s892 + $0xa4] sm:$0xf]
        %v935 = vld [vmem:[%s892 + $0xa8] sm:$0xf]
        %v936 = vld [vmem:[%s892 + $0xac] sm:$0xf]
        %v937 = vld [vmem:[%s892 + $0xb0] sm:$0xf]
        %v938 = vld [vmem:[%s892 + $0xb4] sm:$0xf]
        %v939 = vld [vmem:[%s892 + $0xb8] sm:$0xf]
        %v940 = vld [vmem:[%s892 + $0xbc] sm:$0xf]
        %s941 = scalar_lea.vmem %s2, 2
        %v942 = vld [vmem:[%s941] sm:$0x1]
        %v944 = vlaneseq
        %v945 = vshrl.u32 %v944, 7
        %v946 = vsub.s32 0, %v945
        %v947 = vrot.slane %v942, %v946
        %v997 = vunpack.c.l.b16 %v893
        %v998 = vunpack.c.l.b16 %v894
        %v999 = vunpack.c.l.b16 %v895
        %v1000 = vunpack.c.l.b16 %v896
        %v1001 = vunpack.c.l.b16 %v897
        %v1002 = vunpack.c.l.b16 %v898
        %v1003 = vunpack.c.l.b16 %v899
        %v1004 = vunpack.c.l.b16 %v900
        %v1005 = vunpack.c.l.b16 %v901
        %v1006 = vunpack.c.l.b16 %v902
        %v1007 = vunpack.c.l.b16 %v903
        %v1008 = vunpack.c.l.b16 %v904
        %v1009 = vunpack.c.l.b16 %v905
        %v1010 = vunpack.c.l.b16 %v906
        %v1011 = vunpack.c.l.b16 %v907
        %v1012 = vunpack.c.l.b16 %v908
        %v1013 = vunpack.c.l.b16 %v909
        %v1014 = vunpack.c.l.b16 %v910
        %v1015 = vunpack.c.l.b16 %v911
        %v1016 = vunpack.c.l.b16 %v912
        %v1017 = vunpack.c.l.b16 %v913
        %v1018 = vunpack.c.l.b16 %v914
        %v1019 = vunpack.c.l.b16 %v915
        %v1020 = vunpack.c.l.b16 %v916
        %v1021 = vunpack.c.l.b16 %v917
        %v1022 = vunpack.c.l.b16 %v918
        %v1023 = vunpack.c.l.b16 %v919
        %v1024 = vunpack.c.l.b16 %v920
        %v1025 = vunpack.c.l.b16 %v921
        %v1026 = vunpack.c.l.b16 %v922
        %v1027 = vunpack.c.l.b16 %v923
        %v1028 = vunpack.c.l.b16 %v924
        %v1029 = vunpack.c.l.b16 %v925
        %v1030 = vunpack.c.l.b16 %v926
        %v1031 = vunpack.c.l.b16 %v927
        %v1032 = vunpack.c.l.b16 %v928
        %v1033 = vunpack.c.l.b16 %v929
        %v1034 = vunpack.c.l.b16 %v930
        %v1035 = vunpack.c.l.b16 %v931
        %v1036 = vunpack.c.l.b16 %v932
        %v1037 = vunpack.c.l.b16 %v933
        %v1038 = vunpack.c.l.b16 %v934
        %v1039 = vunpack.c.l.b16 %v935
        %v1040 = vunpack.c.l.b16 %v936
        %v1041 = vunpack.c.l.b16 %v937
        %v1042 = vunpack.c.l.b16 %v938
        %v1043 = vunpack.c.l.b16 %v939
        %v1044 = vunpack.c.l.b16 %v940
        %v1045 = vpack.c.b16 %v998, %v997
        %v1046 = vpack.c.b16 %v1000, %v999
        %v1047 = vpack.c.b16 %v1002, %v1001
        %v1048 = vpack.c.b16 %v1004, %v1003
        %v1049 = vpack.c.b16 %v1006, %v1005
        %v1050 = vpack.c.b16 %v1008, %v1007
        %v1051 = vpack.c.b16 %v1010, %v1009
        %v1052 = vpack.c.b16 %v1012, %v1011
        %v1053 = vpack.c.b16 %v1014, %v1013
        %v1054 = vpack.c.b16 %v1016, %v1015
        %v1055 = vpack.c.b16 %v1018, %v1017
        %v1056 = vpack.c.b16 %v1020, %v1019
        %v1057 = vpack.c.b16 %v1022, %v1021
        %v1058 = vpack.c.b16 %v1024, %v1023
        %v1059 = vpack.c.b16 %v1026, %v1025
        %v1060 = vpack.c.b16 %v1028, %v1027
        %v1061 = vpack.c.b16 %v1030, %v1029
        %v1062 = vpack.c.b16 %v1032, %v1031
        %v1063 = vpack.c.b16 %v1034, %v1033
        %v1064 = vpack.c.b16 %v1036, %v1035
        %v1065 = vpack.c.b16 %v1038, %v1037
        %v1066 = vpack.c.b16 %v1040, %v1039
        %v1067 = vpack.c.b16 %v1042, %v1041
        %v1068 = vpack.c.b16 %v1044, %v1043
        %1093 = vmatprep.subr.bf16.mxu0 0
        %1094 = vmatpush1.bf16.msra.mxu0 %v1045
        %1095 = vmatprep.subr.bf16.mxu0 0
        %1096 = vmatpush1.bf16.msra.mxu0 %v1046
        %1097 = vmatprep.subr.bf16.mxu0 0
        %1098 = vmatpush1.bf16.msra.mxu0 %v1047
        %1099 = vmatprep.subr.bf16.mxu0 0
        %1100 = vmatpush1.bf16.msra.mxu0 %v1048
        %1101 = vmatprep.subr.bf16.mxu0 0
        %1102 = vmatpush1.bf16.msra.mxu0 %v1049
        %1103 = vmatprep.subr.bf16.mxu0 0
        %1104 = vmatpush1.bf16.msra.mxu0 %v1050
        %1105 = vmatprep.subr.bf16.mxu0 0
        %1106 = vmatpush1.bf16.msra.mxu0 %v1051
        %1107 = vmatprep.subr.bf16.mxu0 0
        %1108 = vmatpush1.bf16.msra.mxu0 %v1052
        %1109 = vmatprep.subr.bf16.mxu0 0
        %1110 = vmatpush1.bf16.msra.mxu0 %v1053
        %1111 = vmatprep.subr.bf16.mxu0 0
        %1112 = vmatpush1.bf16.msra.mxu0 %v1054
        %1113 = vmatprep.subr.bf16.mxu0 0
        %1114 = vmatpush1.bf16.msra.mxu0 %v1055
        %1115 = vmatprep.subr.bf16.mxu0 0
        %1116 = vmatpush1.bf16.msra.mxu0 %v1056
        %1117 = vmatprep.subr.bf16.mxu0 0
        %1118 = vmatpush1.bf16.msra.mxu0 %v1057
        %1119 = vmatprep.subr.bf16.mxu0 0
        %1120 = vmatpush1.bf16.msra.mxu0 %v1058
        %1121 = vmatprep.subr.bf16.mxu0 0
        %1122 = vmatpush1.bf16.msra.mxu0 %v1059
        %1123 = vmatprep.subr.bf16.mxu0 0
        %1124 = vmatpush1.bf16.msra.mxu0 %v1060
        %1125 = vmatprep.mubr.bf16.mxu0 %v887
        %1126 = vmatmul.mubr.bf16.gmra.mrb[0].mxu0 %v886
        %v1127 = vpop.f32.mrb[0].mxu0
        %v1128 = vadd.f32 %v947, %v1127
        %v1129 = vpop.f32.mrb[0].mxu0
        %v1130 = vpop.f32.mrb[0].mxu0
        %v1131 = vadd.f32 %v947, %v1130
        %v1132 = vpop.f32.mrb[0].mxu0
        %1133 = vmatprep.mubr.bf16.mxu0 %v890
        %1134 = vmatmul.mubr.bf16.gmra.mrb[0].mxu0 %v889
        %v1135 = vpop.f32.mrb[0].mxu0
        %v1136 = vadd.f32 %v947, %v1135
        %v1137 = vpop.f32.mrb[0].mxu0
        %v1138 = vpop.f32.mrb[0].mxu0
        %v1139 = vadd.f32 %v947, %v1138
        %v1140 = vpop.f32.mrb[0].mxu0
        %1141 = vdwg.mxu0
        %1142 = vmatprep.subr.bf16.mxu0 0
        %1143 = vmatpush1.bf16.msra.mxu0 %v1061
        %1144 = vmatprep.subr.bf16.mxu0 0
        %1145 = vmatpush1.bf16.msra.mxu0 %v1062
        %1146 = vmatprep.subr.bf16.mxu0 0
        %1147 = vmatpush1.bf16.msra.mxu0 %v1063
        %1148 = vmatprep.subr.bf16.mxu0 0
        %1149 = vmatpush1.bf16.msra.mxu0 %v1064
        %1150 = vmatprep.subr.bf16.mxu0 0
        %1151 = vmatpush1.bf16.msra.mxu0 %v1065
        %1152 = vmatprep.subr.bf16.mxu0 0
        %1153 = vmatpush1.bf16.msra.mxu0 %v1066
        %1154 = vmatprep.subr.bf16.mxu0 0
        %1155 = vmatpush1.bf16.msra.mxu0 %v1067
        %1156 = vmatprep.subr.bf16.mxu0 0
        %1157 = vmatpush1.bf16.msra.mxu0 %v1068
        %1158 = vmatprep.subr.bf16.mxu0 0
        %1159 = vmatpush1.bf16.msra.mxu0 0
        %1160 = vmatprep.subr.bf16.mxu0 0
        %1161 = vmatpush1.bf16.msra.mxu0 0
        %1162 = vmatprep.subr.bf16.mxu0 0
        %1163 = vmatpush1.bf16.msra.mxu0 0
        %1164 = vmatprep.subr.bf16.mxu0 0
        %1165 = vmatpush1.bf16.msra.mxu0 0
        %1166 = vmatprep.subr.bf16.mxu0 0
        %1167 = vmatpush1.bf16.msra.mxu0 0
        %1168 = vmatprep.subr.bf16.mxu0 0
        %1169 = vmatpush1.bf16.msra.mxu0 0
        %1170 = vmatprep.subr.bf16.mxu0 0
        %1171 = vmatpush1.bf16.msra.mxu0 0
        %1172 = vmatprep.subr.bf16.mxu0 0
        %1173 = vmatpush1.bf16.msra.mxu0 0
        %1174 = vmatprep.mubr.bf16.mxu0 0
        %1175 = vmatmul.mubr.bf16.gmra.mrb[0].mxu0 %v888
        %v1176 = vpop.f32.mrb[0].mxu0
        %v1177 = vadd.f32 %v1128, %v1176
        %v1178 = vpop.f32.mrb[0].mxu0
        %v1179 = vpop.f32.mrb[0].mxu0
        %v1180 = vadd.f32 %v1131, %v1179
        %v1181 = vpop.f32.mrb[0].mxu0
        %1182 = vmatprep.mubr.bf16.mxu0 0
        %1183 = vmatmul.mubr.bf16.gmra.mrb[0].mxu0 %v891
        %v1184 = vpop.f32.mrb[0].mxu0
        %v1185 = vadd.f32 %v1136, %v1184
        %v1186 = vpop.f32.mrb[0].mxu0
        %v1187 = vpop.f32.mrb[0].mxu0
        %v1188 = vadd.f32 %v1139, %v1187
        %v1189 = vpop.f32.mrb[0].mxu0
        %1190 = vdwg.mxu0
        %v1191 = vmax.f32 %v1177, 0.0
        %v1192 = vmax.f32 %v1180, 0.0
        %v1193 = vmax.f32 %v1185, 0.0
        %v1194 = vmax.f32 %v1188, 0.0
        %v1195 = vld [vmem:[#allocation3] sm:$0xff]
        %v1196 = vld [vmem:[#allocation3 + $0x8] sm:$0xff]
        %v1197 = vld [vmem:[#allocation3 + $0x10] sm:$0xff]
        %v1198 = vld [vmem:[#allocation3 + $0x18] sm:$0xff]
        %v1199 = vadd.f32 %v1191, %v1195
        %v1200 = vadd.f32 %v1192, %v1196
        %v1201 = vadd.f32 %v1193, %v1197
        %v1202 = vadd.f32 %v1194, %v1198
        %1203 = vst [vmem:[#allocation3] sm:$0xff] %v1199
        %1204 = vst [vmem:[#allocation3 + $0x8] sm:$0xff] %v1200
        %1205 = vst [vmem:[#allocation3 + $0x10] sm:$0xff] %v1201
        %1206 = vst [vmem:[#allocation3 + $0x18] sm:$0xff] %v1202
        %1207 = vst [vmem:[#allocation2 + $0x8] sm:$0xff] %v1199
        %1208 = vst [vmem:[#allocation2 + $0x10] sm:$0xff] %v1200
        %1209 = vst [vmem:[#allocation2 + $0x28] sm:$0xff] %v1201
        %1210 = vst [vmem:[#allocation2 + $0x30] sm:$0xff] %v1202
        %v1211 = vld [vmem:[#allocation2] sm:$0xff]
        %v1212 = vld [vmem:[#allocation2 + $0x8] sm:$0xff]
        %v1213 = vld [vmem:[#allocation2 + $0x20] sm:$0xff]
        %v1214 = vld [vmem:[#allocation2 + $0x28] sm:$0xff]
        %v1215 = vld [vmem:[#allocation2 + $0x10] sm:$0xff]
        %v1216 = vld [vmem:[#allocation2 + $0x30] sm:$0xff]
        %v1217 = vld [vmem:[#allocation2 + $0x10] sm:$0xff]
        %v1218 = vld [vmem:[#allocation2 + $0x18] sm:$0xff]
        %v1219 = vld [vmem:[#allocation2 + $0x30] sm:$0xff]
        %v1220 = vld [vmem:[#allocation2 + $0x38] sm:$0xff]
        %v1221 = vpack.c.bf16 %v1212, %v1211
        %v1222 = vpack.c.bf16 %v1215, %v1212
        %v1223 = vpack.c.bf16 %v1218, %v1217
        %v1224 = vpack.c.bf16 %v1214, %v1213
        %v1225 = vpack.c.bf16 %v1216, %v1214
        %v1226 = vpack.c.bf16 %v1220, %v1219
        %s1227 = scalar_lea.vmem [#allocation7], 576
        %v1228 = vld [vmem:[%s1227] sm:$0xf]
        %v1229 = vld [vmem:[%s1227 + $0x4] sm:$0xf]
        %v1230 = vld [vmem:[%s1227 + $0x8] sm:$0xf]
        %v1231 = vld [vmem:[%s1227 + $0xc] sm:$0xf]
        %v1232 = vld [vmem:[%s1227 + $0x10] sm:$0xf]
        %v1233 = vld [vmem:[%s1227 + $0x14] sm:$0xf]
        %v1234 = vld [vmem:[%s1227 + $0x18] sm:$0xf]
        %v1235 = vld [vmem:[%s1227 + $0x1c] sm:$0xf]
        %v1236 = vld [vmem:[%s1227 + $0x20] sm:$0xf]
        %v1237 = vld [vmem:[%s1227 + $0x24] sm:$0xf]
        %v1238 = vld [vmem:[%s1227 + $0x28] sm:$0xf]
        %v1239 = vld [vmem:[%s1227 + $0x2c] sm:$0xf]
        %v1240 = vld [vmem:[%s1227 + $0x30] sm:$0xf]
        %v1241 = vld [vmem:[%s1227 + $0x34] sm:$0xf]
        %v1242 = vld [vmem:[%s1227 + $0x38] sm:$0xf]
        %v1243 = vld [vmem:[%s1227 + $0x3c] sm:$0xf]
        %v1244 = vld [vmem:[%s1227 + $0x40] sm:$0xf]
        %v1245 = vld [vmem:[%s1227 + $0x44] sm:$0xf]
        %v1246 = vld [vmem:[%s1227 + $0x48] sm:$0xf]
        %v1247 = vld [vmem:[%s1227 + $0x4c] sm:$0xf]
        %v1248 = vld [vmem:[%s1227 + $0x50] sm:$0xf]
        %v1249 = vld [vmem:[%s1227 + $0x54] sm:$0xf]
        %v1250 = vld [vmem:[%s1227 + $0x58] sm:$0xf]
        %v1251 = vld [vmem:[%s1227 + $0x5c] sm:$0xf]
        %v1252 = vld [vmem:[%s1227 + $0x60] sm:$0xf]
        %v1253 = vld [vmem:[%s1227 + $0x64] sm:$0xf]
        %v1254 = vld [vmem:[%s1227 + $0x68] sm:$0xf]
        %v1255 = vld [vmem:[%s1227 + $0x6c] sm:$0xf]
        %v1256 = vld [vmem:[%s1227 + $0x70] sm:$0xf]
        %v1257 = vld [vmem:[%s1227 + $0x74] sm:$0xf]
        %v1258 = vld [vmem:[%s1227 + $0x78] sm:$0xf]
        %v1259 = vld [vmem:[%s1227 + $0x7c] sm:$0xf]
        %v1260 = vld [vmem:[%s1227 + $0x80] sm:$0xf]
        %v1261 = vld [vmem:[%s1227 + $0x84] sm:$0xf]
        %v1262 = vld [vmem:[%s1227 + $0x88] sm:$0xf]
        %v1263 = vld [vmem:[%s1227 + $0x8c] sm:$0xf]
        %v1264 = vld [vmem:[%s1227 + $0x90] sm:$0xf]
        %v1265 = vld [vmem:[%s1227 + $0x94] sm:$0xf]
        %v1266 = vld [vmem:[%s1227 + $0x98] sm:$0xf]
        %v1267 = vld [vmem:[%s1227 + $0x9c] sm:$0xf]
        %v1268 = vld [vmem:[%s1227 + $0xa0] sm:$0xf]
        %v1269 = vld [vmem:[%s1227 + $0xa4] sm:$0xf]
        %v1270 = vld [vmem:[%s1227 + $0xa8] sm:$0xf]
        %v1271 = vld [vmem:[%s1227 + $0xac] sm:$0xf]
        %v1272 = vld [vmem:[%s1227 + $0xb0] sm:$0xf]
        %v1273 = vld [vmem:[%s1227 + $0xb4] sm:$0xf]
        %v1274 = vld [vmem:[%s1227 + $0xb8] sm:$0xf]
        %v1275 = vld [vmem:[%s1227 + $0xbc] sm:$0xf]
        %s1276 = scalar_lea.vmem %s2, 3
        %v1277 = vld [vmem:[%s1276] sm:$0x1]
        %v1279 = vlaneseq
        %v1280 = vshrl.u32 %v1279, 7
        %v1281 = vsub.s32 0, %v1280
        %v1282 = vrot.slane %v1277, %v1281
        %v1332 = vunpack.c.l.b16 %v1228
        %v1333 = vunpack.c.l.b16 %v1229
        %v1334 = vunpack.c.l.b16 %v1230
        %v1335 = vunpack.c.l.b16 %v1231
        %v1336 = vunpack.c.l.b16 %v1232
        %v1337 = vunpack.c.l.b16 %v1233
        %v1338 = vunpack.c.l.b16 %v1234
        %v1339 = vunpack.c.l.b16 %v1235
        %v1340 = vunpack.c.l.b16 %v1236
        %v1341 = vunpack.c.l.b16 %v1237
        %v1342 = vunpack.c.l.b16 %v1238
        %v1343 = vunpack.c.l.b16 %v1239
        %v1344 = vunpack.c.l.b16 %v1240
        %v1345 = vunpack.c.l.b16 %v1241
        %v1346 = vunpack.c.l.b16 %v1242
        %v1347 = vunpack.c.l.b16 %v1243
        %v1348 = vunpack.c.l.b16 %v1244
        %v1349 = vunpack.c.l.b16 %v1245
        %v1350 = vunpack.c.l.b16 %v1246
        %v1351 = vunpack.c.l.b16 %v1247
        %v1352 = vunpack.c.l.b16 %v1248
        %v1353 = vunpack.c.l.b16 %v1249
        %v1354 = vunpack.c.l.b16 %v1250
        %v1355 = vunpack.c.l.b16 %v1251
        %v1356 = vunpack.c.l.b16 %v1252
        %v1357 = vunpack.c.l.b16 %v1253
        %v1358 = vunpack.c.l.b16 %v1254
        %v1359 = vunpack.c.l.b16 %v1255
        %v1360 = vunpack.c.l.b16 %v1256
        %v1361 = vunpack.c.l.b16 %v1257
        %v1362 = vunpack.c.l.b16 %v1258
        %v1363 = vunpack.c.l.b16 %v1259
        %v1364 = vunpack.c.l.b16 %v1260
        %v1365 = vunpack.c.l.b16 %v1261
        %v1366 = vunpack.c.l.b16 %v1262
        %v1367 = vunpack.c.l.b16 %v1263
        %v1368 = vunpack.c.l.b16 %v1264
        %v1369 = vunpack.c.l.b16 %v1265
        %v1370 = vunpack.c.l.b16 %v1266
        %v1371 = vunpack.c.l.b16 %v1267
        %v1372 = vunpack.c.l.b16 %v1268
        %v1373 = vunpack.c.l.b16 %v1269
        %v1374 = vunpack.c.l.b16 %v1270
        %v1375 = vunpack.c.l.b16 %v1271
        %v1376 = vunpack.c.l.b16 %v1272
        %v1377 = vunpack.c.l.b16 %v1273
        %v1378 = vunpack.c.l.b16 %v1274
        %v1379 = vunpack.c.l.b16 %v1275
        %v1380 = vpack.c.b16 %v1333, %v1332
        %v1381 = vpack.c.b16 %v1335, %v1334
        %v1382 = vpack.c.b16 %v1337, %v1336
        %v1383 = vpack.c.b16 %v1339, %v1338
        %v1384 = vpack.c.b16 %v1341, %v1340
        %v1385 = vpack.c.b16 %v1343, %v1342
        %v1386 = vpack.c.b16 %v1345, %v1344
        %v1387 = vpack.c.b16 %v1347, %v1346
        %v1388 = vpack.c.b16 %v1349, %v1348
        %v1389 = vpack.c.b16 %v1351, %v1350
        %v1390 = vpack.c.b16 %v1353, %v1352
        %v1391 = vpack.c.b16 %v1355, %v1354
        %v1392 = vpack.c.b16 %v1357, %v1356
        %v1393 = vpack.c.b16 %v1359, %v1358
        %v1394 = vpack.c.b16 %v1361, %v1360
        %v1395 = vpack.c.b16 %v1363, %v1362
        %v1396 = vpack.c.b16 %v1365, %v1364
        %v1397 = vpack.c.b16 %v1367, %v1366
        %v1398 = vpack.c.b16 %v1369, %v1368
        %v1399 = vpack.c.b16 %v1371, %v1370
        %v1400 = vpack.c.b16 %v1373, %v1372
        %v1401 = vpack.c.b16 %v1375, %v1374
        %v1402 = vpack.c.b16 %v1377, %v1376
        %v1403 = vpack.c.b16 %v1379, %v1378
        %1428 = vmatprep.subr.bf16.mxu0 0
        %1429 = vmatpush1.bf16.msra.mxu0 %v1380
        %1430 = vmatprep.subr.bf16.mxu0 0
        %1431 = vmatpush1.bf16.msra.mxu0 %v1381
        %1432 = vmatprep.subr.bf16.mxu0 0
        %1433 = vmatpush1.bf16.msra.mxu0 %v1382
        %1434 = vmatprep.subr.bf16.mxu0 0
        %1435 = vmatpush1.bf16.msra.mxu0 %v1383
        %1436 = vmatprep.subr.bf16.mxu0 0
        %1437 = vmatpush1.bf16.msra.mxu0 %v1384
        %1438 = vmatprep.subr.bf16.mxu0 0
        %1439 = vmatpush1.bf16.msra.mxu0 %v1385
        %1440 = vmatprep.subr.bf16.mxu0 0
        %1441 = vmatpush1.bf16.msra.mxu0 %v1386
        %1442 = vmatprep.subr.bf16.mxu0 0
        %1443 = vmatpush1.bf16.msra.mxu0 %v1387
        %1444 = vmatprep.subr.bf16.mxu0 0
        %1445 = vmatpush1.bf16.msra.mxu0 %v1388
        %1446 = vmatprep.subr.bf16.mxu0 0
        %1447 = vmatpush1.bf16.msra.mxu0 %v1389
        %1448 = vmatprep.subr.bf16.mxu0 0
        %1449 = vmatpush1.bf16.msra.mxu0 %v1390
        %1450 = vmatprep.subr.bf16.mxu0 0
        %1451 = vmatpush1.bf16.msra.mxu0 %v1391
        %1452 = vmatprep.subr.bf16.mxu0 0
        %1453 = vmatpush1.bf16.msra.mxu0 %v1392
        %1454 = vmatprep.subr.bf16.mxu0 0
        %1455 = vmatpush1.bf16.msra.mxu0 %v1393
        %1456 = vmatprep.subr.bf16.mxu0 0
        %1457 = vmatpush1.bf16.msra.mxu0 %v1394
        %1458 = vmatprep.subr.bf16.mxu0 0
        %1459 = vmatpush1.bf16.msra.mxu0 %v1395
        %1460 = vmatprep.mubr.bf16.mxu0 %v1222
        %1461 = vmatmul.mubr.bf16.gmra.mrb[0].mxu0 %v1221
        %v1462 = vpop.f32.mrb[0].mxu0
        %v1463 = vadd.f32 %v1282, %v1462
        %v1464 = vpop.f32.mrb[0].mxu0
        %v1465 = vpop.f32.mrb[0].mxu0
        %v1466 = vadd.f32 %v1282, %v1465
        %v1467 = vpop.f32.mrb[0].mxu0
        %1468 = vmatprep.mubr.bf16.mxu0 %v1225
        %1469 = vmatmul.mubr.bf16.gmra.mrb[0].mxu0 %v1224
        %v1470 = vpop.f32.mrb[0].mxu0
        %v1471 = vadd.f32 %v1282, %v1470
        %v1472 = vpop.f32.mrb[0].mxu0
        %v1473 = vpop.f32.mrb[0].mxu0
        %v1474 = vadd.f32 %v1282, %v1473
        %v1475 = vpop.f32.mrb[0].mxu0
        %1476 = vdwg.mxu0
        %1477 = vmatprep.subr.bf16.mxu0 0
        %1478 = vmatpush1.bf16.msra.mxu0 %v1396
        %1479 = vmatprep.subr.bf16.mxu0 0
        %1480 = vmatpush1.bf16.msra.mxu0 %v1397
        %1481 = vmatprep.subr.bf16.mxu0 0
        %1482 = vmatpush1.bf16.msra.mxu0 %v1398
        %1483 = vmatprep.subr.bf16.mxu0 0
        %1484 = vmatpush1.bf16.msra.mxu0 %v1399
        %1485 = vmatprep.subr.bf16.mxu0 0
        %1486 = vmatpush1.bf16.msra.mxu0 %v1400
        %1487 = vmatprep.subr.bf16.mxu0 0
        %1488 = vmatpush1.bf16.msra.mxu0 %v1401
        %1489 = vmatprep.subr.bf16.mxu0 0
        %1490 = vmatpush1.bf16.msra.mxu0 %v1402
        %1491 = vmatprep.subr.bf16.mxu0 0
        %1492 = vmatpush1.bf16.msra.mxu0 %v1403
        %1493 = vmatprep.subr.bf16.mxu0 0
        %1494 = vmatpush1.bf16.msra.mxu0 0
        %1495 = vmatprep.subr.bf16.mxu0 0
        %1496 = vmatpush1.bf16.msra.mxu0 0
        %1497 = vmatprep.subr.bf16.mxu0 0
        %1498 = vmatpush1.bf16.msra.mxu0 0
        %1499 = vmatprep.subr.bf16.mxu0 0
        %1500 = vmatpush1.bf16.msra.mxu0 0
        %1501 = vmatprep.subr.bf16.mxu0 0
        %1502 = vmatpush1.bf16.msra.mxu0 0
        %1503 = vmatprep.subr.bf16.mxu0 0
        %1504 = vmatpush1.bf16.msra.mxu0 0
        %1505 = vmatprep.subr.bf16.mxu0 0
        %1506 = vmatpush1.bf16.msra.mxu0 0
        %1507 = vmatprep.subr.bf16.mxu0 0
        %1508 = vmatpush1.bf16.msra.mxu0 0
        %1509 = vmatprep.mubr.bf16.mxu0 0
        %1510 = vmatmul.mubr.bf16.gmra.mrb[0].mxu0 %v1223
        %v1511 = vpop.f32.mrb[0].mxu0
        %v1512 = vadd.f32 %v1463, %v1511
        %v1513 = vpop.f32.mrb[0].mxu0
        %v1514 = vpop.f32.mrb[0].mxu0
        %v1515 = vadd.f32 %v1466, %v1514
        %v1516 = vpop.f32.mrb[0].mxu0
        %1517 = vmatprep.mubr.bf16.mxu0 0
        %1518 = vmatmul.mubr.bf16.gmra.mrb[0].mxu0 %v1226
        %v1519 = vpop.f32.mrb[0].mxu0
        %v1520 = vadd.f32 %v1471, %v1519
        %v1521 = vpop.f32.mrb[0].mxu0
        %v1522 = vpop.f32.mrb[0].mxu0
        %v1523 = vadd.f32 %v1474, %v1522
        %v1524 = vpop.f32.mrb[0].mxu0
        %1525 = vdwg.mxu0
        %v1526 = vmax.f32 %v1512, 0.0
        %v1527 = vmax.f32 %v1515, 0.0
        %v1528 = vmax.f32 %v1520, 0.0
        %v1529 = vmax.f32 %v1523, 0.0
        %1530 = vst [vmem:[%s204] sm:$0xff] %v1526
        %1531 = vst [vmem:[%s204 + $0x8] sm:$0xff] %v1527
        %1532 = vst [vmem:[%s204 + $0x10] sm:$0xff] %v1528
        %1533 = vst [vmem:[%s204 + $0x18] sm:$0xff] %v1529
        %s1534 = sand.u32 %s97, 1
        %s1535 = scalar_lea.sflag [#allocation6], %s1534
        %s1536 = sand.u32 %s97, 1
        %s1537 = smul.addr %s1536, 32
        %s1538 = scalar_lea.vmem [#allocation9], %s1537
        // Predicated region
        $region41: #{tpu_custom_call.1} parent=31 // pred_check
          %p1539 = pneg %p107
        $region42: #{tpu_custom_call.1} parent=31 // pred_check_branch
          %1541 = sbr.rel (%p1539) target = $region44
        $region43: #{tpu_custom_call.1} parent=31 // pred_region
          %s1542 = smul.u32 2, %s21
          %s1544 = ssub.s32 512, 512
          %1545 = vsyncadd %s1535, %s1544
          %s1546 = smul.addr %s1542, 2
          %s1547 = smul.addr %s1546, 128
          %s1548 = scalar_lea.hbm %s3, %s1547
          %s1549 = sshll.u32 %s1538, 4
          %s1550 = int_to_ptr.vmem [resolvable:$true] %s1549
          %1555 = dma.vmem_to_hbm [thread:$0]  %s1550, 512, %s1548, %s1535, 128, 128, 8
        $region44: #{tpu_custom_call.1} parent=31 // pred_fallthru
          _
      $region32: #{tpu_custom_call.1} parent=5 // pred_fallthru
        _
      %p1556 = scmp.le.s32.totalorder 2, %s16
      // Predicated region
      $region45: #{tpu_custom_call.1} parent=5 // pred_check
        %p1557 = pneg %p1556
      $region46: #{tpu_custom_call.1} parent=5 // pred_check_branch
        %1559 = sbr.rel (%p1557) target = $region48
      $region47: #{tpu_custom_call.1} parent=5 // pred_region
        %s1560 = ssub.s32 %s16, 2
        // Predicated region
        $region49: #{tpu_custom_call.1} parent=47 // pred_check
          %p1561 = pneg %p113
        $region50: #{tpu_custom_call.1} parent=47 // pred_check_branch
          %1563 = sbr.rel (%p1561) target = $region52
        $region51: #{tpu_custom_call.1} parent=47 // pred_region
          %s1564 = sand.u32 %s98, 1
          %s1565 = scalar_lea.sflag [#allocation6], %s1564
          %s1566 = sand.u32 %s98, 1
          %s1567 = smul.addr %s1566, 32
          %s1568 = scalar_lea.vmem [#allocation9], %s1567
          %1569 = dma.done %s1565, 512
        $region52: #{tpu_custom_call.1} parent=47 // pred_fallthru
          _
      $region48: #{tpu_custom_call.1} parent=5 // pred_fallthru
        _
    $region6: #{tpu_custom_call.1} parent=1 // loop_footer
      %s20 = sadd.s32 1, %s16
    $region7: #{tpu_custom_call.1} parent=1 // loop_footer_branch
      %15 = sbr.rel target = $region3
    $region8: #{tpu_custom_call.1} parent=1 // loop_exit
      _
    %1570 = vsyncpa [#allocation5], 1
    %s1571 = scalar_lea.sflag [#allocation5], 1
    %1572 = vsyncpa %s1571, 1
    %1573 = vsyncpa [#allocation8], 1
    %1574 = vsyncpa [#allocation6], 1
    %s1575 = scalar_lea.sflag [#allocation6], 1
    %1576 = vsyncpa %s1575, 1

</llo_original>
